<compile_context>
chip_gen: v7x
topology: tpu7x:2x2x1
jax: 0.10.0
libtpu: 0.0.40
codegen_flags: <defaults>
</compile_context>

<pallas_src>
import math

import jax
import jax.numpy as jnp
from jax import lax
from jax.experimental import pallas as pl
from jax.experimental.pallas import tpu as pltpu

C, H, W = 3, 300, 300
IN_FEATURES = C * H * W              # 270000

# Row (sublane-dim) chunking of each (300, 300) channel plane.
#   40 rows -> 15 vregs per operand per chunk (no spills); starts are
#   multiples of 8 (sublane-aligned slices); 20-row tail handled with masking.
ROW_CHUNK = 40
_FULL = (H // ROW_CHUNK) * ROW_CHUNK                       # 280
ROW_CHUNKS = [(s, ROW_CHUNK) for s in range(0, _FULL, ROW_CHUNK)]
if H != _FULL:
    ROW_CHUNKS.append((_FULL, H - _FULL))                  # (280, 20) tail


def _dot_sigmoid_kernel(x_ref, w_ref, b_ref, o_ref):
    """x_ref, w_ref: (3, 300, 300) f32 VMEM; b_ref: (1,) f32 SMEM; o_ref: (1, 1) f32 VMEM.

    Computes sigmoid(sum(x * w) + b) with a fully-unrolled chunked
    multiply-accumulate.  The accumulator keeps the full 300-wide lane
    dimension; the only cross-lane (XLU) reduce is the final one.
    """
    acc = jnp.zeros((1, W), jnp.float32)
    for c in range(C):                             # static -> fully unrolled
        for start, size in ROW_CHUNKS:             # static, 8-aligned slices
            xs = x_ref[c, start:start + size, :]   # (size, 300) f32
            ws = w_ref[c, start:start + size, :]
            # VPU multiply + sublane reduce -> lane-wide partial sums.
            acc = acc + jnp.sum(xs * ws, axis=0, keepdims=True)

    # Single cross-lane reduce, bias add, then a numerically stable sigmoid
    # (the exponential argument of the *selected* branch is always <= 0).
    z = jnp.sum(acc, axis=1, keepdims=True) + b_ref[0]      # (1, 1)
    o_ref[...] = jnp.where(z >= 0.0,
                           1.0 / (1.0 + jnp.exp(-z)),
                           jnp.exp(z) / (1.0 + jnp.exp(z)))


def prepare_weight(weight):
    """Call ONCE at init: (1, 270000) f32 -> (3, 300, 300) f32.

    The dot product is order-invariant, so reshaping the *weight* into the
    image's natural CHW shape (row-major, matching torch .flatten() order)
    lets the kernel consume x as-is -- no per-call relayout copy of x."""
    return jnp.asarray(weight, jnp.float32).reshape(C, H, W)


@jax.jit
def naive_classifier_forward(x_chw, w_chw, bias):
    """x_chw: (3, 300, 300) f32 image; w_chw: (3, 300, 300) f32 (from
    prepare_weight); bias: (1,) f32.  Returns (1,) f32 -- matches
    PyTorch NaiveClassifier.forward."""
    out = pl.pallas_call(
        _dot_sigmoid_kernel,
        out_shape=jax.ShapeDtypeStruct((1, 1), jnp.float32),
        # Single full-array block, no grid: ~2.8 MB of VMEM (x + w, padded)
        # is far under every generation's limit, and a multi-step grid would
        # only add per-step overhead for this memory-bound kernel.
        in_specs=[
            pl.BlockSpec(memory_space=pltpu.MemorySpace.VMEM),
            pl.BlockSpec(memory_space=pltpu.MemorySpace.VMEM),
            pl.BlockSpec(memory_space=pltpu.MemorySpace.SMEM),
        ],
        out_specs=pl.BlockSpec(memory_space=pltpu.MemorySpace.VMEM),
    )(x_chw.astype(jnp.float32), w_chw.astype(jnp.float32),
      bias.astype(jnp.float32))

    return out.reshape(1)   # PyTorch returns shape (1,)


def init_params(key):
    """nn.Linear default init: U(-1/sqrt(fan_in), +1/sqrt(fan_in))."""
    kw, kb = jax.random.split(key)
    bound = 1.0 / math.sqrt(IN_FEATURES)
    weight = jax.random.uniform(kw, (1, IN_FEATURES), jnp.float32, -bound, bound)
    bias = jax.random.uniform(kb, (1,), jnp.float32, -bound, bound)
    return weight, bias


if __name__ == "__main__":
    key = jax.random.PRNGKey(0)
    k_x, k_p = jax.random.split(key)

    # Single CHW image; the module's Linear hard-codes 3*300*300 input features.
    x = jax.random.normal(k_x, (C, H, W), dtype=jnp.float32)
    weight, bias = init_params(k_p)

    # Weight slab prepared once (hoisted out of the per-forward path).
    w_chw = prepare_weight(weight)

    y = naive_classifier_forward(x, w_chw, bias)
    y = jax.block_until_ready(y)

    # Pure-JAX reference with f32 accumulation at HIGHEST precision.
    logit = jnp.dot(weight.reshape(-1), x.reshape(-1),
                    precision=lax.Precision.HIGHEST) + bias
    ref = jax.nn.sigmoid(logit)

    assert y.shape == (1,)
    assert jnp.allclose(y, ref, atol=1e-5, rtol=1e-5), (y, ref)

    print("KERNEL_OK")
</pallas_src>

<mosaic_0001>
module attributes {stable_mosaic.version = 11 : i64} {
  func.func @_dot_sigmoid_kernel(%arg0: memref<3x300x300xf32, #tpu.memory_space<vmem>>, %arg1: memref<3x300x300xf32, #tpu.memory_space<vmem>>, %arg2: memref<1xf32, #tpu.memory_space<smem>>, %arg3: memref<1x1xf32, #tpu.memory_space<vmem>>) attributes {dimension_semantics = [], scalar_prefetch = 0 : i64, scratch_operands = 0 : i64, tpu.core_type = #tpu.core_type<tc>} {
    %cst = arith.constant 0.000000e+00 : f32
    %0 = vector.broadcast %cst : f32 to vector<1x300xf32>
    %c0 = arith.constant 0 : index
    %c0_0 = arith.constant 0 : index
    %c0_1 = arith.constant 0 : index
    %1 = vector.load %arg0[%c0, %c0_0, %c0_1] : memref<3x300x300xf32, #tpu.memory_space<vmem>>, vector<1x40x300xf32>
    %2 = vector.shape_cast %1 : vector<1x40x300xf32> to vector<40x300xf32>
    %c0_2 = arith.constant 0 : index
    %c0_3 = arith.constant 0 : index
    %c0_4 = arith.constant 0 : index
    %3 = vector.load %arg1[%c0_2, %c0_3, %c0_4] : memref<3x300x300xf32, #tpu.memory_space<vmem>>, vector<1x40x300xf32>
    %4 = vector.shape_cast %3 : vector<1x40x300xf32> to vector<40x300xf32>
    %5 = arith.mulf %2, %4 : vector<40x300xf32>
    %cst_5 = arith.constant dense<0.000000e+00> : vector<300xf32>
    %6 = vector.multi_reduction <add>, %5, %cst_5 [0] : vector<40x300xf32> to vector<300xf32>
    %7 = vector.shape_cast %6 : vector<300xf32> to vector<1x300xf32>
    %8 = arith.addf %0, %7 : vector<1x300xf32>
    %c0_6 = arith.constant 0 : index
    %c40 = arith.constant 40 : index
    %c0_7 = arith.constant 0 : index
    %9 = vector.load %arg0[%c0_6, %c40, %c0_7] : memref<3x300x300xf32, #tpu.memory_space<vmem>>, vector<1x40x300xf32>
    %10 = vector.shape_cast %9 : vector<1x40x300xf32> to vector<40x300xf32>
    %c0_8 = arith.constant 0 : index
    %c40_9 = arith.constant 40 : index
    %c0_10 = arith.constant 0 : index
    %11 = vector.load %arg1[%c0_8, %c40_9, %c0_10] : memref<3x300x300xf32, #tpu.memory_space<vmem>>, vector<1x40x300xf32>
    %12 = vector.shape_cast %11 : vector<1x40x300xf32> to vector<40x300xf32>
    %13 = arith.mulf %10, %12 : vector<40x300xf32>
    %cst_11 = arith.constant dense<0.000000e+00> : vector<300xf32>
    %14 = vector.multi_reduction <add>, %13, %cst_11 [0] : vector<40x300xf32> to vector<300xf32>
    %15 = vector.shape_cast %14 : vector<300xf32> to vector<1x300xf32>
    %16 = arith.addf %8, %15 : vector<1x300xf32>
    %c0_12 = arith.constant 0 : index
    %c80 = arith.constant 80 : index
    %c0_13 = arith.constant 0 : index
    %17 = vector.load %arg0[%c0_12, %c80, %c0_13] : memref<3x300x300xf32, #tpu.memory_space<vmem>>, vector<1x40x300xf32>
    %18 = vector.shape_cast %17 : vector<1x40x300xf32> to vector<40x300xf32>
    %c0_14 = arith.constant 0 : index
    %c80_15 = arith.constant 80 : index
    %c0_16 = arith.constant 0 : index
    %19 = vector.load %arg1[%c0_14, %c80_15, %c0_16] : memref<3x300x300xf32, #tpu.memory_space<vmem>>, vector<1x40x300xf32>
    %20 = vector.shape_cast %19 : vector<1x40x300xf32> to vector<40x300xf32>
    %21 = arith.mulf %18, %20 : vector<40x300xf32>
    %cst_17 = arith.constant dense<0.000000e+00> : vector<300xf32>
    %22 = vector.multi_reduction <add>, %21, %cst_17 [0] : vector<40x300xf32> to vector<300xf32>
    %23 = vector.shape_cast %22 : vector<300xf32> to vector<1x300xf32>
    %24 = arith.addf %16, %23 : vector<1x300xf32>
    %c0_18 = arith.constant 0 : index
    %c120 = arith.constant 120 : index
    %c0_19 = arith.constant 0 : index
    %25 = vector.load %arg0[%c0_18, %c120, %c0_19] : memref<3x300x300xf32, #tpu.memory_space<vmem>>, vector<1x40x300xf32>
    %26 = vector.shape_cast %25 : vector<1x40x300xf32> to vector<40x300xf32>
    %c0_20 = arith.constant 0 : index
    %c120_21 = arith.constant 120 : index
    %c0_22 = arith.constant 0 : index
    %27 = vector.load %arg1[%c0_20, %c120_21, %c0_22] : memref<3x300x300xf32, #tpu.memory_space<vmem>>, vector<1x40x300xf32>
    %28 = vector.shape_cast %27 : vector<1x40x300xf32> to vector<40x300xf32>
    %29 = arith.mulf %26, %28 : vector<40x300xf32>
    %cst_23 = arith.constant dense<0.000000e+00> : vector<300xf32>
    %30 = vector.multi_reduction <add>, %29, %cst_23 [0] : vector<40x300xf32> to vector<300xf32>
    %31 = vector.shape_cast %30 : vector<300xf32> to vector<1x300xf32>
    %32 = arith.addf %24, %31 : vector<1x300xf32>
    %c0_24 = arith.constant 0 : index
    %c160 = arith.constant 160 : index
    %c0_25 = arith.constant 0 : index
    %33 = vector.load %arg0[%c0_24, %c160, %c0_25] : memref<3x300x300xf32, #tpu.memory_space<vmem>>, vector<1x40x300xf32>
    %34 = vector.shape_cast %33 : vector<1x40x300xf32> to vector<40x300xf32>
    %c0_26 = arith.constant 0 : index
    %c160_27 = arith.constant 160 : index
    %c0_28 = arith.constant 0 : index
    %35 = vector.load %arg1[%c0_26, %c160_27, %c0_28] : memref<3x300x300xf32, #tpu.memory_space<vmem>>, vector<1x40x300xf32>
    %36 = vector.shape_cast %35 : vector<1x40x300xf32> to vector<40x300xf32>
    %37 = arith.mulf %34, %36 : vector<40x300xf32>
    %cst_29 = arith.constant dense<0.000000e+00> : vector<300xf32>
    %38 = vector.multi_reduction <add>, %37, %cst_29 [0] : vector<40x300xf32> to vector<300xf32>
    %39 = vector.shape_cast %38 : vector<300xf32> to vector<1x300xf32>
    %40 = arith.addf %32, %39 : vector<1x300xf32>
    %c0_30 = arith.constant 0 : index
    %c200 = arith.constant 200 : index
    %c0_31 = arith.constant 0 : index
    %41 = vector.load %arg0[%c0_30, %c200, %c0_31] : memref<3x300x300xf32, #tpu.memory_space<vmem>>, vector<1x40x300xf32>
    %42 = vector.shape_cast %41 : vector<1x40x300xf32> to vector<40x300xf32>
    %c0_32 = arith.constant 0 : index
    %c200_33 = arith.constant 200 : index
    %c0_34 = arith.constant 0 : index
    %43 = vector.load %arg1[%c0_32, %c200_33, %c0_34] : memref<3x300x300xf32, #tpu.memory_space<vmem>>, vector<1x40x300xf32>
    %44 = vector.shape_cast %43 : vector<1x40x300xf32> to vector<40x300xf32>
    %45 = arith.mulf %42, %44 : vector<40x300xf32>
    %cst_35 = arith.constant dense<0.000000e+00> : vector<300xf32>
    %46 = vector.multi_reduction <add>, %45, %cst_35 [0] : vector<40x300xf32> to vector<300xf32>
    %47 = vector.shape_cast %46 : vector<300xf32> to vector<1x300xf32>
    %48 = arith.addf %40, %47 : vector<1x300xf32>
    %c0_36 = arith.constant 0 : index
    %c240 = arith.constant 240 : index
    %c0_37 = arith.constant 0 : index
    %49 = vector.load %arg0[%c0_36, %c240, %c0_37] : memref<3x300x300xf32, #tpu.memory_space<vmem>>, vector<1x40x300xf32>
    %50 = vector.shape_cast %49 : vector<1x40x300xf32> to vector<40x300xf32>
    %c0_38 = arith.constant 0 : index
    %c240_39 = arith.constant 240 : index
    %c0_40 = arith.constant 0 : index
    %51 = vector.load %arg1[%c0_38, %c240_39, %c0_40] : memref<3x300x300xf32, #tpu.memory_space<vmem>>, vector<1x40x300xf32>
    %52 = vector.shape_cast %51 : vector<1x40x300xf32> to vector<40x300xf32>
    %53 = arith.mulf %50, %52 : vector<40x300xf32>
    %cst_41 = arith.constant dense<0.000000e+00> : vector<300xf32>
    %54 = vector.multi_reduction <add>, %53, %cst_41 [0] : vector<40x300xf32> to vector<300xf32>
    %55 = vector.shape_cast %54 : vector<300xf32> to vector<1x300xf32>
    %56 = arith.addf %48, %55 : vector<1x300xf32>
    %c0_42 = arith.constant 0 : index
    %c280 = arith.constant 280 : index
    %c0_43 = arith.constant 0 : index
    %57 = vector.load %arg0[%c0_42, %c280, %c0_43] : memref<3x300x300xf32, #tpu.memory_space<vmem>>, vector<1x20x300xf32>
    %58 = vector.shape_cast %57 : vector<1x20x300xf32> to vector<20x300xf32>
    %c0_44 = arith.constant 0 : index
    %c280_45 = arith.constant 280 : index
    %c0_46 = arith.constant 0 : index
    %59 = vector.load %arg1[%c0_44, %c280_45, %c0_46] : memref<3x300x300xf32, #tpu.memory_space<vmem>>, vector<1x20x300xf32>
    %60 = vector.shape_cast %59 : vector<1x20x300xf32> to vector<20x300xf32>
    %61 = arith.mulf %58, %60 : vector<20x300xf32>
    %cst_47 = arith.constant dense<0.000000e+00> : vector<300xf32>
    %62 = vector.multi_reduction <add>, %61, %cst_47 [0] : vector<20x300xf32> to vector<300xf32>
    %63 = vector.shape_cast %62 : vector<300xf32> to vector<1x300xf32>
    %64 = arith.addf %56, %63 : vector<1x300xf32>
    %c1 = arith.constant 1 : index
    %c0_48 = arith.constant 0 : index
    %c0_49 = arith.constant 0 : index
    %65 = vector.load %arg0[%c1, %c0_48, %c0_49] : memref<3x300x300xf32, #tpu.memory_space<vmem>>, vector<1x40x300xf32>
    %66 = vector.shape_cast %65 : vector<1x40x300xf32> to vector<40x300xf32>
    %c1_50 = arith.constant 1 : index
    %c0_51 = arith.constant 0 : index
    %c0_52 = arith.constant 0 : index
    %67 = vector.load %arg1[%c1_50, %c0_51, %c0_52] : memref<3x300x300xf32, #tpu.memory_space<vmem>>, vector<1x40x300xf32>
    %68 = vector.shape_cast %67 : vector<1x40x300xf32> to vector<40x300xf32>
    %69 = arith.mulf %66, %68 : vector<40x300xf32>
    %cst_53 = arith.constant dense<0.000000e+00> : vector<300xf32>
    %70 = vector.multi_reduction <add>, %69, %cst_53 [0] : vector<40x300xf32> to vector<300xf32>
    %71 = vector.shape_cast %70 : vector<300xf32> to vector<1x300xf32>
    %72 = arith.addf %64, %71 : vector<1x300xf32>
    %c1_54 = arith.constant 1 : index
    %c40_55 = arith.constant 40 : index
    %c0_56 = arith.constant 0 : index
    %73 = vector.load %arg0[%c1_54, %c40_55, %c0_56] : memref<3x300x300xf32, #tpu.memory_space<vmem>>, vector<1x40x300xf32>
    %74 = vector.shape_cast %73 : vector<1x40x300xf32> to vector<40x300xf32>
    %c1_57 = arith.constant 1 : index
    %c40_58 = arith.constant 40 : index
    %c0_59 = arith.constant 0 : index
    %75 = vector.load %arg1[%c1_57, %c40_58, %c0_59] : memref<3x300x300xf32, #tpu.memory_space<vmem>>, vector<1x40x300xf32>
    %76 = vector.shape_cast %75 : vector<1x40x300xf32> to vector<40x300xf32>
    %77 = arith.mulf %74, %76 : vector<40x300xf32>
    %cst_60 = arith.constant dense<0.000000e+00> : vector<300xf32>
    %78 = vector.multi_reduction <add>, %77, %cst_60 [0] : vector<40x300xf32> to vector<300xf32>
    %79 = vector.shape_cast %78 : vector<300xf32> to vector<1x300xf32>
    %80 = arith.addf %72, %79 : vector<1x300xf32>
    %c1_61 = arith.constant 1 : index
    %c80_62 = arith.constant 80 : index
    %c0_63 = arith.constant 0 : index
    %81 = vector.load %arg0[%c1_61, %c80_62, %c0_63] : memref<3x300x300xf32, #tpu.memory_space<vmem>>, vector<1x40x300xf32>
    %82 = vector.shape_cast %81 : vector<1x40x300xf32> to vector<40x300xf32>
    %c1_64 = arith.constant 1 : index
    %c80_65 = arith.constant 80 : index
    %c0_66 = arith.constant 0 : index
    %83 = vector.load %arg1[%c1_64, %c80_65, %c0_66] : memref<3x300x300xf32, #tpu.memory_space<vmem>>, vector<1x40x300xf32>
    %84 = vector.shape_cast %83 : vector<1x40x300xf32> to vector<40x300xf32>
    %85 = arith.mulf %82, %84 : vector<40x300xf32>
    %cst_67 = arith.constant dense<0.000000e+00> : vector<300xf32>
    %86 = vector.multi_reduction <add>, %85, %cst_67 [0] : vector<40x300xf32> to vector<300xf32>
    %87 = vector.shape_cast %86 : vector<300xf32> to vector<1x300xf32>
    %88 = arith.addf %80, %87 : vector<1x300xf32>
    %c1_68 = arith.constant 1 : index
    %c120_69 = arith.constant 120 : index
    %c0_70 = arith.constant 0 : index
    %89 = vector.load %arg0[%c1_68, %c120_69, %c0_70] : memref<3x300x300xf32, #tpu.memory_space<vmem>>, vector<1x40x300xf32>
    %90 = vector.shape_cast %89 : vector<1x40x300xf32> to vector<40x300xf32>
    %c1_71 = arith.constant 1 : index
    %c120_72 = arith.constant 120 : index
    %c0_73 = arith.constant 0 : index
    %91 = vector.load %arg1[%c1_71, %c120_72, %c0_73] : memref<3x300x300xf32, #tpu.memory_space<vmem>>, vector<1x40x300xf32>
    %92 = vector.shape_cast %91 : vector<1x40x300xf32> to vector<40x300xf32>
    %93 = arith.mulf %90, %92 : vector<40x300xf32>
    %cst_74 = arith.constant dense<0.000000e+00> : vector<300xf32>
    %94 = vector.multi_reduction <add>, %93, %cst_74 [0] : vector<40x300xf32> to vector<300xf32>
    %95 = vector.shape_cast %94 : vector<300xf32> to vector<1x300xf32>
    %96 = arith.addf %88, %95 : vector<1x300xf32>
    %c1_75 = arith.constant 1 : index
    %c160_76 = arith.constant 160 : index
    %c0_77 = arith.constant 0 : index
    %97 = vector.load %arg0[%c1_75, %c160_76, %c0_77] : memref<3x300x300xf32, #tpu.memory_space<vmem>>, vector<1x40x300xf32>
    %98 = vector.shape_cast %97 : vector<1x40x300xf32> to vector<40x300xf32>
    %c1_78 = arith.constant 1 : index
    %c160_79 = arith.constant 160 : index
    %c0_80 = arith.constant 0 : index
    %99 = vector.load %arg1[%c1_78, %c160_79, %c0_80] : memref<3x300x300xf32, #tpu.memory_space<vmem>>, vector<1x40x300xf32>
    %100 = vector.shape_cast %99 : vector<1x40x300xf32> to vector<40x300xf32>
    %101 = arith.mulf %98, %100 : vector<40x300xf32>
    %cst_81 = arith.constant dense<0.000000e+00> : vector<300xf32>
    %102 = vector.multi_reduction <add>, %101, %cst_81 [0] : vector<40x300xf32> to vector<300xf32>
    %103 = vector.shape_cast %102 : vector<300xf32> to vector<1x300xf32>
    %104 = arith.addf %96, %103 : vector<1x300xf32>
    %c1_82 = arith.constant 1 : index
    %c200_83 = arith.constant 200 : index
    %c0_84 = arith.constant 0 : index
    %105 = vector.load %arg0[%c1_82, %c200_83, %c0_84] : memref<3x300x300xf32, #tpu.memory_space<vmem>>, vector<1x40x300xf32>
    %106 = vector.shape_cast %105 : vector<1x40x300xf32> to vector<40x300xf32>
    %c1_85 = arith.constant 1 : index
    %c200_86 = arith.constant 200 : index
    %c0_87 = arith.constant 0 : index
    %107 = vector.load %arg1[%c1_85, %c200_86, %c0_87] : memref<3x300x300xf32, #tpu.memory_space<vmem>>, vector<1x40x300xf32>
    %108 = vector.shape_cast %107 : vector<1x40x300xf32> to vector<40x300xf32>
    %109 = arith.mulf %106, %108 : vector<40x300xf32>
    %cst_88 = arith.constant dense<0.000000e+00> : vector<300xf32>
    %110 = vector.multi_reduction <add>, %109, %cst_88 [0] : vector<40x300xf32> to vector<300xf32>
    %111 = vector.shape_cast %110 : vector<300xf32> to vector<1x300xf32>
    %112 = arith.addf %104, %111 : vector<1x300xf32>
    %c1_89 = arith.constant 1 : index
    %c240_90 = arith.constant 240 : index
    %c0_91 = arith.constant 0 : index
    %113 = vector.load %arg0[%c1_89, %c240_90, %c0_91] : memref<3x300x300xf32, #tpu.memory_space<vmem>>, vector<1x40x300xf32>
    %114 = vector.shape_cast %113 : vector<1x40x300xf32> to vector<40x300xf32>
    %c1_92 = arith.constant 1 : index
    %c240_93 = arith.constant 240 : index
    %c0_94 = arith.constant 0 : index
    %115 = vector.load %arg1[%c1_92, %c240_93, %c0_94] : memref<3x300x300xf32, #tpu.memory_space<vmem>>, vector<1x40x300xf32>
    %116 = vector.shape_cast %115 : vector<1x40x300xf32> to vector<40x300xf32>
    %117 = arith.mulf %114, %116 : vector<40x300xf32>
    %cst_95 = arith.constant dense<0.000000e+00> : vector<300xf32>
    %118 = vector.multi_reduction <add>, %117, %cst_95 [0] : vector<40x300xf32> to vector<300xf32>
    %119 = vector.shape_cast %118 : vector<300xf32> to vector<1x300xf32>
    %120 = arith.addf %112, %119 : vector<1x300xf32>
    %c1_96 = arith.constant 1 : index
    %c280_97 = arith.constant 280 : index
    %c0_98 = arith.constant 0 : index
    %121 = vector.load %arg0[%c1_96, %c280_97, %c0_98] : memref<3x300x300xf32, #tpu.memory_space<vmem>>, vector<1x20x300xf32>
    %122 = vector.shape_cast %121 : vector<1x20x300xf32> to vector<20x300xf32>
    %c1_99 = arith.constant 1 : index
    %c280_100 = arith.constant 280 : index
    %c0_101 = arith.constant 0 : index
    %123 = vector.load %arg1[%c1_99, %c280_100, %c0_101] : memref<3x300x300xf32, #tpu.memory_space<vmem>>, vector<1x20x300xf32>
    %124 = vector.shape_cast %123 : vector<1x20x300xf32> to vector<20x300xf32>
    %125 = arith.mulf %122, %124 : vector<20x300xf32>
    %cst_102 = arith.constant dense<0.000000e+00> : vector<300xf32>
    %126 = vector.multi_reduction <add>, %125, %cst_102 [0] : vector<20x300xf32> to vector<300xf32>
    %127 = vector.shape_cast %126 : vector<300xf32> to vector<1x300xf32>
    %128 = arith.addf %120, %127 : vector<1x300xf32>
    %c2 = arith.constant 2 : index
    %c0_103 = arith.constant 0 : index
    %c0_104 = arith.constant 0 : index
    %129 = vector.load %arg0[%c2, %c0_103, %c0_104] : memref<3x300x300xf32, #tpu.memory_space<vmem>>, vector<1x40x300xf32>
    %130 = vector.shape_cast %129 : vector<1x40x300xf32> to vector<40x300xf32>
    %c2_105 = arith.constant 2 : index
    %c0_106 = arith.constant 0 : index
    %c0_107 = arith.constant 0 : index
    %131 = vector.load %arg1[%c2_105, %c0_106, %c0_107] : memref<3x300x300xf32, #tpu.memory_space<vmem>>, vector<1x40x300xf32>
    %132 = vector.shape_cast %131 : vector<1x40x300xf32> to vector<40x300xf32>
    %133 = arith.mulf %130, %132 : vector<40x300xf32>
    %cst_108 = arith.constant dense<0.000000e+00> : vector<300xf32>
    %134 = vector.multi_reduction <add>, %133, %cst_108 [0] : vector<40x300xf32> to vector<300xf32>
    %135 = vector.shape_cast %134 : vector<300xf32> to vector<1x300xf32>
    %136 = arith.addf %128, %135 : vector<1x300xf32>
    %c2_109 = arith.constant 2 : index
    %c40_110 = arith.constant 40 : index
    %c0_111 = arith.constant 0 : index
    %137 = vector.load %arg0[%c2_109, %c40_110, %c0_111] : memref<3x300x300xf32, #tpu.memory_space<vmem>>, vector<1x40x300xf32>
    %138 = vector.shape_cast %137 : vector<1x40x300xf32> to vector<40x300xf32>
    %c2_112 = arith.constant 2 : index
    %c40_113 = arith.constant 40 : index
    %c0_114 = arith.constant 0 : index
    %139 = vector.load %arg1[%c2_112, %c40_113, %c0_114] : memref<3x300x300xf32, #tpu.memory_space<vmem>>, vector<1x40x300xf32>
    %140 = vector.shape_cast %139 : vector<1x40x300xf32> to vector<40x300xf32>
    %141 = arith.mulf %138, %140 : vector<40x300xf32>
    %cst_115 = arith.constant dense<0.000000e+00> : vector<300xf32>
    %142 = vector.multi_reduction <add>, %141, %cst_115 [0] : vector<40x300xf32> to vector<300xf32>
    %143 = vector.shape_cast %142 : vector<300xf32> to vector<1x300xf32>
    %144 = arith.addf %136, %143 : vector<1x300xf32>
    %c2_116 = arith.constant 2 : index
    %c80_117 = arith.constant 80 : index
    %c0_118 = arith.constant 0 : index
    %145 = vector.load %arg0[%c2_116, %c80_117, %c0_118] : memref<3x300x300xf32, #tpu.memory_space<vmem>>, vector<1x40x300xf32>
    %146 = vector.shape_cast %145 : vector<1x40x300xf32> to vector<40x300xf32>
    %c2_119 = arith.constant 2 : index
    %c80_120 = arith.constant 80 : index
    %c0_121 = arith.constant 0 : index
    %147 = vector.load %arg1[%c2_119, %c80_120, %c0_121] : memref<3x300x300xf32, #tpu.memory_space<vmem>>, vector<1x40x300xf32>
    %148 = vector.shape_cast %147 : vector<1x40x300xf32> to vector<40x300xf32>
    %149 = arith.mulf %146, %148 : vector<40x300xf32>
    %cst_122 = arith.constant dense<0.000000e+00> : vector<300xf32>
    %150 = vector.multi_reduction <add>, %149, %cst_122 [0] : vector<40x300xf32> to vector<300xf32>
    %151 = vector.shape_cast %150 : vector<300xf32> to vector<1x300xf32>
    %152 = arith.addf %144, %151 : vector<1x300xf32>
    %c2_123 = arith.constant 2 : index
    %c120_124 = arith.constant 120 : index
    %c0_125 = arith.constant 0 : index
    %153 = vector.load %arg0[%c2_123, %c120_124, %c0_125] : memref<3x300x300xf32, #tpu.memory_space<vmem>>, vector<1x40x300xf32>
    %154 = vector.shape_cast %153 : vector<1x40x300xf32> to vector<40x300xf32>
    %c2_126 = arith.constant 2 : index
    %c120_127 = arith.constant 120 : index
    %c0_128 = arith.constant 0 : index
    %155 = vector.load %arg1[%c2_126, %c120_127, %c0_128] : memref<3x300x300xf32, #tpu.memory_space<vmem>>, vector<1x40x300xf32>
    %156 = vector.shape_cast %155 : vector<1x40x300xf32> to vector<40x300xf32>
    %157 = arith.mulf %154, %156 : vector<40x300xf32>
    %cst_129 = arith.constant dense<0.000000e+00> : vector<300xf32>
    %158 = vector.multi_reduction <add>, %157, %cst_129 [0] : vector<40x300xf32> to vector<300xf32>
    %159 = vector.shape_cast %158 : vector<300xf32> to vector<1x300xf32>
    %160 = arith.addf %152, %159 : vector<1x300xf32>
    %c2_130 = arith.constant 2 : index
    %c160_131 = arith.constant 160 : index
    %c0_132 = arith.constant 0 : index
    %161 = vector.load %arg0[%c2_130, %c160_131, %c0_132] : memref<3x300x300xf32, #tpu.memory_space<vmem>>, vector<1x40x300xf32>
    %162 = vector.shape_cast %161 : vector<1x40x300xf32> to vector<40x300xf32>
    %c2_133 = arith.constant 2 : index
    %c160_134 = arith.constant 160 : index
    %c0_135 = arith.constant 0 : index
    %163 = vector.load %arg1[%c2_133, %c160_134, %c0_135] : memref<3x300x300xf32, #tpu.memory_space<vmem>>, vector<1x40x300xf32>
    %164 = vector.shape_cast %163 : vector<1x40x300xf32> to vector<40x300xf32>
    %165 = arith.mulf %162, %164 : vector<40x300xf32>
    %cst_136 = arith.constant dense<0.000000e+00> : vector<300xf32>
    %166 = vector.multi_reduction <add>, %165, %cst_136 [0] : vector<40x300xf32> to vector<300xf32>
    %167 = vector.shape_cast %166 : vector<300xf32> to vector<1x300xf32>
    %168 = arith.addf %160, %167 : vector<1x300xf32>
    %c2_137 = arith.constant 2 : index
    %c200_138 = arith.constant 200 : index
    %c0_139 = arith.constant 0 : index
    %169 = vector.load %arg0[%c2_137, %c200_138, %c0_139] : memref<3x300x300xf32, #tpu.memory_space<vmem>>, vector<1x40x300xf32>
    %170 = vector.shape_cast %169 : vector<1x40x300xf32> to vector<40x300xf32>
    %c2_140 = arith.constant 2 : index
    %c200_141 = arith.constant 200 : index
    %c0_142 = arith.constant 0 : index
    %171 = vector.load %arg1[%c2_140, %c200_141, %c0_142] : memref<3x300x300xf32, #tpu.memory_space<vmem>>, vector<1x40x300xf32>
    %172 = vector.shape_cast %171 : vector<1x40x300xf32> to vector<40x300xf32>
    %173 = arith.mulf %170, %172 : vector<40x300xf32>
    %cst_143 = arith.constant dense<0.000000e+00> : vector<300xf32>
    %174 = vector.multi_reduction <add>, %173, %cst_143 [0] : vector<40x300xf32> to vector<300xf32>
    %175 = vector.shape_cast %174 : vector<300xf32> to vector<1x300xf32>
    %176 = arith.addf %168, %175 : vector<1x300xf32>
    %c2_144 = arith.constant 2 : index
    %c240_145 = arith.constant 240 : index
    %c0_146 = arith.constant 0 : index
    %177 = vector.load %arg0[%c2_144, %c240_145, %c0_146] : memref<3x300x300xf32, #tpu.memory_space<vmem>>, vector<1x40x300xf32>
    %178 = vector.shape_cast %177 : vector<1x40x300xf32> to vector<40x300xf32>
    %c2_147 = arith.constant 2 : index
    %c240_148 = arith.constant 240 : index
    %c0_149 = arith.constant 0 : index
    %179 = vector.load %arg1[%c2_147, %c240_148, %c0_149] : memref<3x300x300xf32, #tpu.memory_space<vmem>>, vector<1x40x300xf32>
    %180 = vector.shape_cast %179 : vector<1x40x300xf32> to vector<40x300xf32>
    %181 = arith.mulf %178, %180 : vector<40x300xf32>
    %cst_150 = arith.constant dense<0.000000e+00> : vector<300xf32>
    %182 = vector.multi_reduction <add>, %181, %cst_150 [0] : vector<40x300xf32> to vector<300xf32>
    %183 = vector.shape_cast %182 : vector<300xf32> to vector<1x300xf32>
    %184 = arith.addf %176, %183 : vector<1x300xf32>
    %c2_151 = arith.constant 2 : index
    %c280_152 = arith.constant 280 : index
    %c0_153 = arith.constant 0 : index
    %185 = vector.load %arg0[%c2_151, %c280_152, %c0_153] : memref<3x300x300xf32, #tpu.memory_space<vmem>>, vector<1x20x300xf32>
    %186 = vector.shape_cast %185 : vector<1x20x300xf32> to vector<20x300xf32>
    %c2_154 = arith.constant 2 : index
    %c280_155 = arith.constant 280 : index
    %c0_156 = arith.constant 0 : index
    %187 = vector.load %arg1[%c2_154, %c280_155, %c0_156] : memref<3x300x300xf32, #tpu.memory_space<vmem>>, vector<1x20x300xf32>
    %188 = vector.shape_cast %187 : vector<1x20x300xf32> to vector<20x300xf32>
    %189 = arith.mulf %186, %188 : vector<20x300xf32>
    %cst_157 = arith.constant dense<0.000000e+00> : vector<300xf32>
    %190 = vector.multi_reduction <add>, %189, %cst_157 [0] : vector<20x300xf32> to vector<300xf32>
    %191 = vector.shape_cast %190 : vector<300xf32> to vector<1x300xf32>
    %192 = arith.addf %184, %191 : vector<1x300xf32>
    %cst_158 = arith.constant dense<0.000000e+00> : vector<1xf32>
    %193 = vector.multi_reduction <add>, %192, %cst_158 [1] : vector<1x300xf32> to vector<1xf32>
    %194 = vector.shape_cast %193 : vector<1xf32> to vector<1x1xf32>
    %c0_159 = arith.constant 0 : index
    %195 = memref.load %arg2[%c0_159] : memref<1xf32, #tpu.memory_space<smem>>
    %196 = vector.broadcast %195 : f32 to vector<1x1xf32>
    %197 = arith.addf %194, %196 : vector<1x1xf32>
    %cst_160 = arith.constant 0.000000e+00 : f32
    %198 = vector.broadcast %cst_160 : f32 to vector<1x1xf32>
    %199 = arith.cmpf oge, %197, %198 : vector<1x1xf32>
    %cst_161 = arith.constant 0.000000e+00 : f32
    %200 = vector.broadcast %cst_161 : f32 to vector<1x1xf32>
    %201 = arith.subf %200, %197 : vector<1x1xf32>
    %202 = math.exp %201 : vector<1x1xf32>
    %cst_162 = arith.constant 1.000000e+00 : f32
    %203 = vector.broadcast %cst_162 : f32 to vector<1x1xf32>
    %204 = arith.addf %203, %202 : vector<1x1xf32>
    %cst_163 = arith.constant 1.000000e+00 : f32
    %205 = vector.broadcast %cst_163 : f32 to vector<1x1xf32>
    %206 = arith.divf %205, %204 : vector<1x1xf32>
    %207 = math.exp %197 : vector<1x1xf32>
    %208 = math.exp %197 : vector<1x1xf32>
    %cst_164 = arith.constant 1.000000e+00 : f32
    %209 = vector.broadcast %cst_164 : f32 to vector<1x1xf32>
    %210 = arith.addf %209, %208 : vector<1x1xf32>
    %211 = arith.divf %207, %210 : vector<1x1xf32>
    %212 = arith.select %199, %206, %211 : vector<1x1xi1>, vector<1x1xf32>
    %c0_165 = arith.constant 0 : index
    %c0_166 = arith.constant 0 : index
    %213 = vector.load %arg3[%c0_165, %c0_166] : memref<1x1xf32, #tpu.memory_space<vmem>>, vector<1x1xf32>
    tpu.vector_store %arg3[%c0_165, %c0_166], %212 {strides = array<i32>} : memref<1x1xf32, #tpu.memory_space<vmem>>, vector<1x1xf32>,
    return
  }
}

</mosaic_0001>

<llo_original>
// kernel: naive_classifier_forward.1
$region0: #{naive_classifier_forward.1}
  #allocation0 [shape = 'u32[]', space=smem, size = 0x4, offset = 0x4, fixed_abs, tag = 'smem constant byte address 0x4 - core index']
  #allocation1 [shape = 'u32[144,128]{1,0:T(1,128)}', space=vmem, size = 0x12000, scoped, tag = 'internal scratch']
  #allocation2 [shape = 'f32[1]{0:T(128)S(6)}', space=smem, size = 0x200, scoped, tag = 'scoped memory for naive_classifier_forward.1']
  %s0 = inlined_call_operand.hbm [shape: f32[3,300,300], index: 0, kind: input, shape index: {}]
  %s1 = inlined_call_operand.hbm [shape: f32[3,300,300], index: 1, kind: input, shape index: {}]
  %s2 = inlined_call_operand.<no memory space> [shape: f32[1], index: 2, kind: input, shape index: {}]
  %s3 = inlined_call_operand.hbm [shape: f32[1,1], index: 3, kind: output, shape index: {}]
  %s4 = sld [smem:[#allocation0]]
  $region30: #{naive_classifier_forward.1} parent=0
    _
  %s6 = ssub.s32 1, %s4
  %s7 = scalar_select 0, %s6, %s4
  %8 = sst [smem:[#allocation2]] %s2
  $region1: #{naive_classifier_forward.1} parent=0
    #allocation3 [shape = 'u8[1400832]{0}', space=vmem, size = 0x156000, scoped, tag = 'input window, operand 0, single buffered']
    #allocation4 [shape = 's32[1]{0}', space=sflag, size = 0x4, scoped, tag = 'scoped memory for naive_classifier_forward.1']
    #allocation5 [shape = 's32[1]{0}', space=sflag, size = 0x4, scoped, tag = 'scoped memory for naive_classifier_forward.1']
    #allocation6 [shape = 'u8[1400832]{0}', space=vmem, size = 0x156000, scoped, tag = 'input window, operand 1, single buffered']
    #allocation7 [shape = 's32[1]{0}', space=sflag, size = 0x4, scoped, tag = 'scoped memory for naive_classifier_forward.1']
    #allocation8 [shape = 'u8[512]{0}', space=vmem, size = 0x400, scoped, tag = 'output window, operand 0, single buffered']
    %9 = vsyncpa [#allocation4], 0
    %10 = vsyncpa [#allocation7], 0
    %11 = vsyncpa [#allocation5], 0
    // Predicated region
    $region2: #{naive_classifier_forward.1} parent=1 // pred_check
      _
    $region3: #{naive_classifier_forward.1} parent=1 // pred_check_branch
      %13 = sbr.rel (0) target = $region5
    $region4: #{naive_classifier_forward.1} parent=1 // pred_region
      %s15 = ssub.s32 43776, 43776
      %16 = vsyncadd [#allocation4], %s15
      %s17 = sshll.u32 [#allocation3], 4
      %s18 = int_to_ptr.vmem [resolvable:$true] %s17
      %23 = dma.hbm_to_vmem [thread:$0]  %s0, 43776, %s18, [#allocation4], 384, 384, 24
    $region5: #{naive_classifier_forward.1} parent=1 // pred_fallthru
      _
    // Predicated region
    $region6: #{naive_classifier_forward.1} parent=1 // pred_check
      _
    $region7: #{naive_classifier_forward.1} parent=1 // pred_check_branch
      %25 = sbr.rel (0) target = $region9
    $region8: #{naive_classifier_forward.1} parent=1 // pred_region
      %s27 = ssub.s32 43776, 43776
      %28 = vsyncadd [#allocation7], %s27
      %s29 = sshll.u32 [#allocation6], 4
      %s30 = int_to_ptr.vmem [resolvable:$true] %s29
      %35 = dma.hbm_to_vmem [thread:$0]  %s1, 43776, %s30, [#allocation7], 384, 384, 24
    $region9: #{naive_classifier_forward.1} parent=1 // pred_fallthru
      _
    // Predicated region
    $region10: #{naive_classifier_forward.1} parent=1 // pred_check
      _
    $region11: #{naive_classifier_forward.1} parent=1 // pred_check_branch
      %37 = sbr.rel (0) target = $region13
    $region12: #{naive_classifier_forward.1} parent=1 // pred_region
      _
    $region13: #{naive_classifier_forward.1} parent=1 // pred_fallthru
      _
    // Predicated region
    $region14: #{naive_classifier_forward.1} parent=1 // pred_check
      _
    $region15: #{naive_classifier_forward.1} parent=1 // pred_check_branch
      %39 = sbr.rel (0) target = $region17
    $region16: #{naive_classifier_forward.1} parent=1 // pred_region
      %40 = dma.done [#allocation4], 43776
    $region17: #{naive_classifier_forward.1} parent=1 // pred_fallthru
      _
    // Predicated region
    $region18: #{naive_classifier_forward.1} parent=1 // pred_check
      _
    $region19: #{naive_classifier_forward.1} parent=1 // pred_check_branch
      %42 = sbr.rel (0) target = $region21
    $region20: #{naive_classifier_forward.1} parent=1 // pred_region
      %43 = dma.done [#allocation7], 43776
    $region21: #{naive_classifier_forward.1} parent=1 // pred_fallthru
      _
    %v44 = vld [vmem:[#allocation3] sm:$0xff]
    %v45 = vld [vmem:[#allocation3 + $0x8] sm:$0xff]
    %v46 = vld [vmem:[#allocation3 + $0x10] sm:$0xff]
    %v47 = vld [vmem:[#allocation3 + $0x18] sm:$0xff]
    %v48 = vld [vmem:[#allocation3 + $0x20] sm:$0xff]
    %v49 = vld [vmem:[#allocation3 + $0x28] sm:$0xff]
    %v50 = vld [vmem:[#allocation3 + $0x30] sm:$0xff]
    %v51 = vld [vmem:[#allocation3 + $0x38] sm:$0xff]
    %v52 = vld [vmem:[#allocation3 + $0x40] sm:$0xff]
    %v53 = vld [vmem:[#allocation3 + $0x48] sm:$0xff]
    %v54 = vld [vmem:[#allocation3 + $0x50] sm:$0xff]
    %v55 = vld [vmem:[#allocation3 + $0x58] sm:$0xff]
    %v56 = vld [vmem:[#allocation3 + $0x60] sm:$0xff]
    %v57 = vld [vmem:[#allocation3 + $0x68] sm:$0xff]
    %v58 = vld [vmem:[#allocation3 + $0x70] sm:$0xff]
    %v59 = vld [vmem:[#allocation6] sm:$0xff]
    %v60 = vld [vmem:[#allocation6 + $0x8] sm:$0xff]
    %v61 = vld [vmem:[#allocation6 + $0x10] sm:$0xff]
    %v62 = vld [vmem:[#allocation6 + $0x18] sm:$0xff]
    %v63 = vld [vmem:[#allocation6 + $0x20] sm:$0xff]
    %v64 = vld [vmem:[#allocation6 + $0x28] sm:$0xff]
    %v65 = vld [vmem:[#allocation6 + $0x30] sm:$0xff]
    %v66 = vld [vmem:[#allocation6 + $0x38] sm:$0xff]
    %v67 = vld [vmem:[#allocation6 + $0x40] sm:$0xff]
    %v68 = vld [vmem:[#allocation6 + $0x48] sm:$0xff]
    %v69 = vld [vmem:[#allocation6 + $0x50] sm:$0xff]
    %v70 = vld [vmem:[#allocation6 + $0x58] sm:$0xff]
    %v71 = vld [vmem:[#allocation6 + $0x60] sm:$0xff]
    %v72 = vld [vmem:[#allocation6 + $0x68] sm:$0xff]
    %v73 = vld [vmem:[#allocation6 + $0x70] sm:$0xff]
    %v74 = vmul.f32 %v44, %v59
    %v75 = vmul.f32 %v45, %v60
    %v76 = vmul.f32 %v46, %v61
    %v77 = vmul.f32 %v47, %v62
    %v78 = vmul.f32 %v48, %v63
    %v79 = vmul.f32 %v49, %v64
    %v80 = vmul.f32 %v50, %v65
    %v81 = vmul.f32 %v51, %v66
    %v82 = vmul.f32 %v52, %v67
    %v83 = vmul.f32 %v53, %v68
    %v84 = vmul.f32 %v54, %v69
    %v85 = vmul.f32 %v55, %v70
    %v86 = vmul.f32 %v56, %v71
    %v87 = vmul.f32 %v57, %v72
    %v88 = vmul.f32 %v58, %v73
    %v89 = vadd.f32 %v74, %v77
    %v90 = vadd.f32 %v89, %v80
    %v91 = vadd.f32 %v90, %v83
    %v92 = vadd.f32 %v91, %v86
    %v93 = vrot.slane %v92, 4
    %v94 = vadd.f32 %v92, %v93
    %v95 = vrot.slane %v94, 2
    %v96 = vadd.f32 %v94, %v95
    %v97 = vrot.slane %v96, 1
    %v98 = vadd.f32 %v96, %v97
    %v99 = vadd.f32 %v75, %v78
    %v100 = vadd.f32 %v99, %v81
    %v101 = vadd.f32 %v100, %v84
    %v102 = vadd.f32 %v101, %v87
    %v103 = vrot.slane %v102, 4
    %v104 = vadd.f32 %v102, %v103
    %v105 = vrot.slane %v104, 2
    %v106 = vadd.f32 %v104, %v105
    %v107 = vrot.slane %v106, 1
    %v108 = vadd.f32 %v106, %v107
    %vm109 = vcmask 359424
    %v110 = vsel %vm109, %v76, 0.0
    %v111 = vsel %vm109, %v79, 0.0
    %v112 = vadd.f32 %v110, %v111
    %v113 = vsel %vm109, %v82, 0.0
    %v114 = vadd.f32 %v112, %v113
    %v115 = vsel %vm109, %v85, 0.0
    %v116 = vadd.f32 %v114, %v115
    %v117 = vsel %vm109, %v88, 0.0
    %v118 = vadd.f32 %v116, %v117
    %v119 = vrot.slane %v118, 4
    %v120 = vadd.f32 %v118, %v119
    %v121 = vrot.slane %v120, 2
    %v122 = vadd.f32 %v120, %v121
    %v123 = vrot.slane %v122, 1
    %v124 = vadd.f32 %v122, %v123
    %v125 = vadd.f32 %v98, 0.0
    %v126 = vadd.f32 %v108, 0.0
    %v127 = vadd.f32 %v124, 0.0
    %v128 = vld [vmem:[#allocation3 + $0x78] sm:$0xff]
    %v129 = vld [vmem:[#allocation3 + $0x80] sm:$0xff]
    %v130 = vld [vmem:[#allocation3 + $0x88] sm:$0xff]
    %v131 = vld [vmem:[#allocation3 + $0x90] sm:$0xff]
    %v132 = vld [vmem:[#allocation3 + $0x98] sm:$0xff]
    %v133 = vld [vmem:[#allocation3 + $0xa0] sm:$0xff]
    %v134 = vld [vmem:[#allocation3 + $0xa8] sm:$0xff]
    %v135 = vld [vmem:[#allocation3 + $0xb0] sm:$0xff]
    %v136 = vld [vmem:[#allocation3 + $0xb8] sm:$0xff]
    %v137 = vld [vmem:[#allocation3 + $0xc0] sm:$0xff]
    %v138 = vld [vmem:[#allocation3 + $0xc8] sm:$0xff]
    %v139 = vld [vmem:[#allocation3 + $0xd0] sm:$0xff]
    %v140 = vld [vmem:[#allocation3 + $0xd8] sm:$0xff]
    %v141 = vld [vmem:[#allocation3 + $0xe0] sm:$0xff]
    %v142 = vld [vmem:[#allocation3 + $0xe8] sm:$0xff]
    %v143 = vld [vmem:[#allocation6 + $0x78] sm:$0xff]
    %v144 = vld [vmem:[#allocation6 + $0x80] sm:$0xff]
    %v145 = vld [vmem:[#allocation6 + $0x88] sm:$0xff]
    %v146 = vld [vmem:[#allocation6 + $0x90] sm:$0xff]
    %v147 = vld [vmem:[#allocation6 + $0x98] sm:$0xff]
    %v148 = vld [vmem:[#allocation6 + $0xa0] sm:$0xff]
    %v149 = vld [vmem:[#allocation6 + $0xa8] sm:$0xff]
    %v150 = vld [vmem:[#allocation6 + $0xb0] sm:$0xff]
    %v151 = vld [vmem:[#allocation6 + $0xb8] sm:$0xff]
    %v152 = vld [vmem:[#allocation6 + $0xc0] sm:$0xff]
    %v153 = vld [vmem:[#allocation6 + $0xc8] sm:$0xff]
    %v154 = vld [vmem:[#allocation6 + $0xd0] sm:$0xff]
    %v155 = vld [vmem:[#allocation6 + $0xd8] sm:$0xff]
    %v156 = vld [vmem:[#allocation6 + $0xe0] sm:$0xff]
    %v157 = vld [vmem:[#allocation6 + $0xe8] sm:$0xff]
    %v158 = vmul.f32 %v128, %v143
    %v159 = vmul.f32 %v129, %v144
    %v160 = vmul.f32 %v130, %v145
    %v161 = vmul.f32 %v131, %v146
    %v162 = vmul.f32 %v132, %v147
    %v163 = vmul.f32 %v133, %v148
    %v164 = vmul.f32 %v134, %v149
    %v165 = vmul.f32 %v135, %v150
    %v166 = vmul.f32 %v136, %v151
    %v167 = vmul.f32 %v137, %v152
    %v168 = vmul.f32 %v138, %v153
    %v169 = vmul.f32 %v139, %v154
    %v170 = vmul.f32 %v140, %v155
    %v171 = vmul.f32 %v141, %v156
    %v172 = vmul.f32 %v142, %v157
    %v173 = vadd.f32 %v158, %v161
    %v174 = vadd.f32 %v173, %v164
    %v175 = vadd.f32 %v174, %v167
    %v176 = vadd.f32 %v175, %v170
    %v177 = vrot.slane %v176, 4
    %v178 = vadd.f32 %v176, %v177
    %v179 = vrot.slane %v178, 2
    %v180 = vadd.f32 %v178, %v179
    %v181 = vrot.slane %v180, 1
    %v182 = vadd.f32 %v180, %v181
    %v183 = vadd.f32 %v159, %v162
    %v184 = vadd.f32 %v183, %v165
    %v185 = vadd.f32 %v184, %v168
    %v186 = vadd.f32 %v185, %v171
    %v187 = vrot.slane %v186, 4
    %v188 = vadd.f32 %v186, %v187
    %v189 = vrot.slane %v188, 2
    %v190 = vadd.f32 %v188, %v189
    %v191 = vrot.slane %v190, 1
    %v192 = vadd.f32 %v190, %v191
    %v193 = vsel %vm109, %v160, 0.0
    %v194 = vsel %vm109, %v163, 0.0
    %v195 = vadd.f32 %v193, %v194
    %v196 = vsel %vm109, %v166, 0.0
    %v197 = vadd.f32 %v195, %v196
    %v198 = vsel %vm109, %v169, 0.0
    %v199 = vadd.f32 %v197, %v198
    %v200 = vsel %vm109, %v172, 0.0
    %v201 = vadd.f32 %v199, %v200
    %v202 = vrot.slane %v201, 4
    %v203 = vadd.f32 %v201, %v202
    %v204 = vrot.slane %v203, 2
    %v205 = vadd.f32 %v203, %v204
    %v206 = vrot.slane %v205, 1
    %v207 = vadd.f32 %v205, %v206
    %v208 = vadd.f32 %v125, %v182
    %v209 = vadd.f32 %v126, %v192
    %v210 = vadd.f32 %v127, %v207
    %v211 = vld [vmem:[#allocation3 + $0xf0] sm:$0xff]
    %v212 = vld [vmem:[#allocation3 + $0xf8] sm:$0xff]
    %v213 = vld [vmem:[#allocation3 + $0x100] sm:$0xff]
    %v214 = vld [vmem:[#allocation3 + $0x108] sm:$0xff]
    %v215 = vld [vmem:[#allocation3 + $0x110] sm:$0xff]
    %v216 = vld [vmem:[#allocation3 + $0x118] sm:$0xff]
    %v217 = vld [vmem:[#allocation3 + $0x120] sm:$0xff]
    %v218 = vld [vmem:[#allocation3 + $0x128] sm:$0xff]
    %v219 = vld [vmem:[#allocation3 + $0x130] sm:$0xff]
    %v220 = vld [vmem:[#allocation3 + $0x138] sm:$0xff]
    %v221 = vld [vmem:[#allocation3 + $0x140] sm:$0xff]
    %v222 = vld [vmem:[#allocation3 + $0x148] sm:$0xff]
    %v223 = vld [vmem:[#allocation3 + $0x150] sm:$0xff]
    %v224 = vld [vmem:[#allocation3 + $0x158] sm:$0xff]
    %v225 = vld [vmem:[#allocation3 + $0x160] sm:$0xff]
    %v226 = vld [vmem:[#allocation6 + $0xf0] sm:$0xff]
    %v227 = vld [vmem:[#allocation6 + $0xf8] sm:$0xff]
    %v228 = vld [vmem:[#allocation6 + $0x100] sm:$0xff]
    %v229 = vld [vmem:[#allocation6 + $0x108] sm:$0xff]
    %v230 = vld [vmem:[#allocation6 + $0x110] sm:$0xff]
    %v231 = vld [vmem:[#allocation6 + $0x118] sm:$0xff]
    %v232 = vld [vmem:[#allocation6 + $0x120] sm:$0xff]
    %v233 = vld [vmem:[#allocation6 + $0x128] sm:$0xff]
    %v234 = vld [vmem:[#allocation6 + $0x130] sm:$0xff]
    %v235 = vld [vmem:[#allocation6 + $0x138] sm:$0xff]
    %v236 = vld [vmem:[#allocation6 + $0x140] sm:$0xff]
    %v237 = vld [vmem:[#allocation6 + $0x148] sm:$0xff]
    %v238 = vld [vmem:[#allocation6 + $0x150] sm:$0xff]
    %v239 = vld [vmem:[#allocation6 + $0x158] sm:$0xff]
    %v240 = vld [vmem:[#allocation6 + $0x160] sm:$0xff]
    %v241 = vmul.f32 %v211, %v226
    %v242 = vmul.f32 %v212, %v227
    %v243 = vmul.f32 %v213, %v228
    %v244 = vmul.f32 %v214, %v229
    %v245 = vmul.f32 %v215, %v230
    %v246 = vmul.f32 %v216, %v231
    %v247 = vmul.f32 %v217, %v232
    %v248 = vmul.f32 %v218, %v233
    %v249 = vmul.f32 %v219, %v234
    %v250 = vmul.f32 %v220, %v235
    %v251 = vmul.f32 %v221, %v236
    %v252 = vmul.f32 %v222, %v237
    %v253 = vmul.f32 %v223, %v238
    %v254 = vmul.f32 %v224, %v239
    %v255 = vmul.f32 %v225, %v240
    %v256 = vadd.f32 %v241, %v244
    %v257 = vadd.f32 %v256, %v247
    %v258 = vadd.f32 %v257, %v250
    %v259 = vadd.f32 %v258, %v253
    %v260 = vrot.slane %v259, 4
    %v261 = vadd.f32 %v259, %v260
    %v262 = vrot.slane %v261, 2
    %v263 = vadd.f32 %v261, %v262
    %v264 = vrot.slane %v263, 1
    %v265 = vadd.f32 %v263, %v264
    %v266 = vadd.f32 %v242, %v245
    %v267 = vadd.f32 %v266, %v248
    %v268 = vadd.f32 %v267, %v251
    %v269 = vadd.f32 %v268, %v254
    %v270 = vrot.slane %v269, 4
    %v271 = vadd.f32 %v269, %v270
    %v272 = vrot.slane %v271, 2
    %v273 = vadd.f32 %v271, %v272
    %v274 = vrot.slane %v273, 1
    %v275 = vadd.f32 %v273, %v274
    %v276 = vsel %vm109, %v243, 0.0
    %v277 = vsel %vm109, %v246, 0.0
    %v278 = vadd.f32 %v276, %v277
    %v279 = vsel %vm109, %v249, 0.0
    %v280 = vadd.f32 %v278, %v279
    %v281 = vsel %vm109, %v252, 0.0
    %v282 = vadd.f32 %v280, %v281
    %v283 = vsel %vm109, %v255, 0.0
    %v284 = vadd.f32 %v282, %v283
    %v285 = vrot.slane %v284, 4
    %v286 = vadd.f32 %v284, %v285
    %v287 = vrot.slane %v286, 2
    %v288 = vadd.f32 %v286, %v287
    %v289 = vrot.slane %v288, 1
    %v290 = vadd.f32 %v288, %v289
    %v291 = vadd.f32 %v208, %v265
    %v292 = vadd.f32 %v209, %v275
    %v293 = vadd.f32 %v210, %v290
    %v294 = vld [vmem:[#allocation3 + $0x168] sm:$0xff]
    %v295 = vld [vmem:[#allocation3 + $0x170] sm:$0xff]
    %v296 = vld [vmem:[#allocation3 + $0x178] sm:$0xff]
    %v297 = vld [vmem:[#allocation3 + $0x180] sm:$0xff]
    %v298 = vld [vmem:[#allocation3 + $0x188] sm:$0xff]
    %v299 = vld [vmem:[#allocation3 + $0x190] sm:$0xff]
    %v300 = vld [vmem:[#allocation3 + $0x198] sm:$0xff]
    %v301 = vld [vmem:[#allocation3 + $0x1a0] sm:$0xff]
    %v302 = vld [vmem:[#allocation3 + $0x1a8] sm:$0xff]
    %v303 = vld [vmem:[#allocation3 + $0x1b0] sm:$0xff]
    %v304 = vld [vmem:[#allocation3 + $0x1b8] sm:$0xff]
    %v305 = vld [vmem:[#allocation3 + $0x1c0] sm:$0xff]
    %v306 = vld [vmem:[#allocation3 + $0x1c8] sm:$0xff]
    %v307 = vld [vmem:[#allocation3 + $0x1d0] sm:$0xff]
    %v308 = vld [vmem:[#allocation3 + $0x1d8] sm:$0xff]
    %v309 = vld [vmem:[#allocation6 + $0x168] sm:$0xff]
    %v310 = vld [vmem:[#allocation6 + $0x170] sm:$0xff]
    %v311 = vld [vmem:[#allocation6 + $0x178] sm:$0xff]
    %v312 = vld [vmem:[#allocation6 + $0x180] sm:$0xff]
    %v313 = vld [vmem:[#allocation6 + $0x188] sm:$0xff]
    %v314 = vld [vmem:[#allocation6 + $0x190] sm:$0xff]
    %v315 = vld [vmem:[#allocation6 + $0x198] sm:$0xff]
    %v316 = vld [vmem:[#allocation6 + $0x1a0] sm:$0xff]
    %v317 = vld [vmem:[#allocation6 + $0x1a8] sm:$0xff]
    %v318 = vld [vmem:[#allocation6 + $0x1b0] sm:$0xff]
    %v319 = vld [vmem:[#allocation6 + $0x1b8] sm:$0xff]
    %v320 = vld [vmem:[#allocation6 + $0x1c0] sm:$0xff]
    %v321 = vld [vmem:[#allocation6 + $0x1c8] sm:$0xff]
    %v322 = vld [vmem:[#allocation6 + $0x1d0] sm:$0xff]
    %v323 = vld [vmem:[#allocation6 + $0x1d8] sm:$0xff]
    %v324 = vmul.f32 %v294, %v309
    %v325 = vmul.f32 %v295, %v310
    %v326 = vmul.f32 %v296, %v311
    %v327 = vmul.f32 %v297, %v312
    %v328 = vmul.f32 %v298, %v313
    %v329 = vmul.f32 %v299, %v314
    %v330 = vmul.f32 %v300, %v315
    %v331 = vmul.f32 %v301, %v316
    %v332 = vmul.f32 %v302, %v317
    %v333 = vmul.f32 %v303, %v318
    %v334 = vmul.f32 %v304, %v319
    %v335 = vmul.f32 %v305, %v320
    %v336 = vmul.f32 %v306, %v321
    %v337 = vmul.f32 %v307, %v322
    %v338 = vmul.f32 %v308, %v323
    %v339 = vadd.f32 %v324, %v327
    %v340 = vadd.f32 %v339, %v330
    %v341 = vadd.f32 %v340, %v333
    %v342 = vadd.f32 %v341, %v336
    %v343 = vrot.slane %v342, 4
    %v344 = vadd.f32 %v342, %v343
    %v345 = vrot.slane %v344, 2
    %v346 = vadd.f32 %v344, %v345
    %v347 = vrot.slane %v346, 1
    %v348 = vadd.f32 %v346, %v347
    %v349 = vadd.f32 %v325, %v328
    %v350 = vadd.f32 %v349, %v331
    %v351 = vadd.f32 %v350, %v334
    %v352 = vadd.f32 %v351, %v337
    %v353 = vrot.slane %v352, 4
    %v354 = vadd.f32 %v352, %v353
    %v355 = vrot.slane %v354, 2
    %v356 = vadd.f32 %v354, %v355
    %v357 = vrot.slane %v356, 1
    %v358 = vadd.f32 %v356, %v357
    %v359 = vsel %vm109, %v326, 0.0
    %v360 = vsel %vm109, %v329, 0.0
    %v361 = vadd.f32 %v359, %v360
    %v362 = vsel %vm109, %v332, 0.0
    %v363 = vadd.f32 %v361, %v362
    %v364 = vsel %vm109, %v335, 0.0
    %v365 = vadd.f32 %v363, %v364
    %v366 = vsel %vm109, %v338, 0.0
    %v367 = vadd.f32 %v365, %v366
    %v368 = vrot.slane %v367, 4
    %v369 = vadd.f32 %v367, %v368
    %v370 = vrot.slane %v369, 2
    %v371 = vadd.f32 %v369, %v370
    %v372 = vrot.slane %v371, 1
    %v373 = vadd.f32 %v371, %v372
    %v374 = vadd.f32 %v291, %v348
    %v375 = vadd.f32 %v292, %v358
    %v376 = vadd.f32 %v293, %v373
    %v377 = vld [vmem:[#allocation3 + $0x1e0] sm:$0xff]
    %v378 = vld [vmem:[#allocation3 + $0x1e8] sm:$0xff]
    %v379 = vld [vmem:[#allocation3 + $0x1f0] sm:$0xff]
    %v380 = vld [vmem:[#allocation3 + $0x1f8] sm:$0xff]
    %v381 = vld [vmem:[#allocation3 + $0x200] sm:$0xff]
    %v382 = vld [vmem:[#allocation3 + $0x208] sm:$0xff]
    %v383 = vld [vmem:[#allocation3 + $0x210] sm:$0xff]
    %v384 = vld [vmem:[#allocation3 + $0x218] sm:$0xff]
    %v385 = vld [vmem:[#allocation3 + $0x220] sm:$0xff]
    %v386 = vld [vmem:[#allocation3 + $0x228] sm:$0xff]
    %v387 = vld [vmem:[#allocation3 + $0x230] sm:$0xff]
    %v388 = vld [vmem:[#allocation3 + $0x238] sm:$0xff]
    %v389 = vld [vmem:[#allocation3 + $0x240] sm:$0xff]
    %v390 = vld [vmem:[#allocation3 + $0x248] sm:$0xff]
    %v391 = vld [vmem:[#allocation3 + $0x250] sm:$0xff]
    %v392 = vld [vmem:[#allocation6 + $0x1e0] sm:$0xff]
    %v393 = vld [vmem:[#allocation6 + $0x1e8] sm:$0xff]
    %v394 = vld [vmem:[#allocation6 + $0x1f0] sm:$0xff]
    %v395 = vld [vmem:[#allocation6 + $0x1f8] sm:$0xff]
    %v396 = vld [vmem:[#allocation6 + $0x200] sm:$0xff]
    %v397 = vld [vmem:[#allocation6 + $0x208] sm:$0xff]
    %v398 = vld [vmem:[#allocation6 + $0x210] sm:$0xff]
    %v399 = vld [vmem:[#allocation6 + $0x218] sm:$0xff]
    %v400 = vld [vmem:[#allocation6 + $0x220] sm:$0xff]
    %v401 = vld [vmem:[#allocation6 + $0x228] sm:$0xff]
    %v402 = vld [vmem:[#allocation6 + $0x230] sm:$0xff]
    %v403 = vld [vmem:[#allocation6 + $0x238] sm:$0xff]
    %v404 = vld [vmem:[#allocation6 + $0x240] sm:$0xff]
    %v405 = vld [vmem:[#allocation6 + $0x248] sm:$0xff]
    %v406 = vld [vmem:[#allocation6 + $0x250] sm:$0xff]
    %v407 = vmul.f32 %v377, %v392
    %v408 = vmul.f32 %v378, %v393
    %v409 = vmul.f32 %v379, %v394
    %v410 = vmul.f32 %v380, %v395
    %v411 = vmul.f32 %v381, %v396
    %v412 = vmul.f32 %v382, %v397
    %v413 = vmul.f32 %v383, %v398
    %v414 = vmul.f32 %v384, %v399
    %v415 = vmul.f32 %v385, %v400
    %v416 = vmul.f32 %v386, %v401
    %v417 = vmul.f32 %v387, %v402
    %v418 = vmul.f32 %v388, %v403
    %v419 = vmul.f32 %v389, %v404
    %v420 = vmul.f32 %v390, %v405
    %v421 = vmul.f32 %v391, %v406
    %v422 = vadd.f32 %v407, %v410
    %v423 = vadd.f32 %v422, %v413
    %v424 = vadd.f32 %v423, %v416
    %v425 = vadd.f32 %v424, %v419
    %v426 = vrot.slane %v425, 4
    %v427 = vadd.f32 %v425, %v426
    %v428 = vrot.slane %v427, 2
    %v429 = vadd.f32 %v427, %v428
    %v430 = vrot.slane %v429, 1
    %v431 = vadd.f32 %v429, %v430
    %v432 = vadd.f32 %v408, %v411
    %v433 = vadd.f32 %v432, %v414
    %v434 = vadd.f32 %v433, %v417
    %v435 = vadd.f32 %v434, %v420
    %v436 = vrot.slane %v435, 4
    %v437 = vadd.f32 %v435, %v436
    %v438 = vrot.slane %v437, 2
    %v439 = vadd.f32 %v437, %v438
    %v440 = vrot.slane %v439, 1
    %v441 = vadd.f32 %v439, %v440
    %v442 = vsel %vm109, %v409, 0.0
    %v443 = vsel %vm109, %v412, 0.0
    %v444 = vadd.f32 %v442, %v443
    %v445 = vsel %vm109, %v415, 0.0
    %v446 = vadd.f32 %v444, %v445
    %v447 = vsel %vm109, %v418, 0.0
    %v448 = vadd.f32 %v446, %v447
    %v449 = vsel %vm109, %v421, 0.0
    %v450 = vadd.f32 %v448, %v449
    %v451 = vrot.slane %v450, 4
    %v452 = vadd.f32 %v450, %v451
    %v453 = vrot.slane %v452, 2
    %v454 = vadd.f32 %v452, %v453
    %v455 = vrot.slane %v454, 1
    %v456 = vadd.f32 %v454, %v455
    %v457 = vadd.f32 %v374, %v431
    %v458 = vadd.f32 %v375, %v441
    %v459 = vadd.f32 %v376, %v456
    %v460 = vld [vmem:[#allocation3 + $0x258] sm:$0xff]
    %v461 = vld [vmem:[#allocation3 + $0x260] sm:$0xff]
    %v462 = vld [vmem:[#allocation3 + $0x268] sm:$0xff]
    %v463 = vld [vmem:[#allocation3 + $0x270] sm:$0xff]
    %v464 = vld [vmem:[#allocation3 + $0x278] sm:$0xff]
    %v465 = vld [vmem:[#allocation3 + $0x280] sm:$0xff]
    %v466 = vld [vmem:[#allocation3 + $0x288] sm:$0xff]
    %v467 = vld [vmem:[#allocation3 + $0x290] sm:$0xff]
    %v468 = vld [vmem:[#allocation3 + $0x298] sm:$0xff]
    %v469 = vld [vmem:[#allocation3 + $0x2a0] sm:$0xff]
    %v470 = vld [vmem:[#allocation3 + $0x2a8] sm:$0xff]
    %v471 = vld [vmem:[#allocation3 + $0x2b0] sm:$0xff]
    %v472 = vld [vmem:[#allocation3 + $0x2b8] sm:$0xff]
    %v473 = vld [vmem:[#allocation3 + $0x2c0] sm:$0xff]
    %v474 = vld [vmem:[#allocation3 + $0x2c8] sm:$0xff]
    %v475 = vld [vmem:[#allocation6 + $0x258] sm:$0xff]
    %v476 = vld [vmem:[#allocation6 + $0x260] sm:$0xff]
    %v477 = vld [vmem:[#allocation6 + $0x268] sm:$0xff]
    %v478 = vld [vmem:[#allocation6 + $0x270] sm:$0xff]
    %v479 = vld [vmem:[#allocation6 + $0x278] sm:$0xff]
    %v480 = vld [vmem:[#allocation6 + $0x280] sm:$0xff]
    %v481 = vld [vmem:[#allocation6 + $0x288] sm:$0xff]
    %v482 = vld [vmem:[#allocation6 + $0x290] sm:$0xff]
    %v483 = vld [vmem:[#allocation6 + $0x298] sm:$0xff]
    %v484 = vld [vmem:[#allocation6 + $0x2a0] sm:$0xff]
    %v485 = vld [vmem:[#allocation6 + $0x2a8] sm:$0xff]
    %v486 = vld [vmem:[#allocation6 + $0x2b0] sm:$0xff]
    %v487 = vld [vmem:[#allocation6 + $0x2b8] sm:$0xff]
    %v488 = vld [vmem:[#allocation6 + $0x2c0] sm:$0xff]
    %v489 = vld [vmem:[#allocation6 + $0x2c8] sm:$0xff]
    %v490 = vmul.f32 %v460, %v475
    %v491 = vmul.f32 %v461, %v476
    %v492 = vmul.f32 %v462, %v477
    %v493 = vmul.f32 %v463, %v478
    %v494 = vmul.f32 %v464, %v479
    %v495 = vmul.f32 %v465, %v480
    %v496 = vmul.f32 %v466, %v481
    %v497 = vmul.f32 %v467, %v482
    %v498 = vmul.f32 %v468, %v483
    %v499 = vmul.f32 %v469, %v484
    %v500 = vmul.f32 %v470, %v485
    %v501 = vmul.f32 %v471, %v486
    %v502 = vmul.f32 %v472, %v487
    %v503 = vmul.f32 %v473, %v488
    %v504 = vmul.f32 %v474, %v489
    %v505 = vadd.f32 %v490, %v493
    %v506 = vadd.f32 %v505, %v496
    %v507 = vadd.f32 %v506, %v499
    %v508 = vadd.f32 %v507, %v502
    %v509 = vrot.slane %v508, 4
    %v510 = vadd.f32 %v508, %v509
    %v511 = vrot.slane %v510, 2
    %v512 = vadd.f32 %v510, %v511
    %v513 = vrot.slane %v512, 1
    %v514 = vadd.f32 %v512, %v513
    %v515 = vadd.f32 %v491, %v494
    %v516 = vadd.f32 %v515, %v497
    %v517 = vadd.f32 %v516, %v500
    %v518 = vadd.f32 %v517, %v503
    %v519 = vrot.slane %v518, 4
    %v520 = vadd.f32 %v518, %v519
    %v521 = vrot.slane %v520, 2
    %v522 = vadd.f32 %v520, %v521
    %v523 = vrot.slane %v522, 1
    %v524 = vadd.f32 %v522, %v523
    %v525 = vsel %vm109, %v492, 0.0
    %v526 = vsel %vm109, %v495, 0.0
    %v527 = vadd.f32 %v525, %v526
    %v528 = vsel %vm109, %v498, 0.0
    %v529 = vadd.f32 %v527, %v528
    %v530 = vsel %vm109, %v501, 0.0
    %v531 = vadd.f32 %v529, %v530
    %v532 = vsel %vm109, %v504, 0.0
    %v533 = vadd.f32 %v531, %v532
    %v534 = vrot.slane %v533, 4
    %v535 = vadd.f32 %v533, %v534
    %v536 = vrot.slane %v535, 2
    %v537 = vadd.f32 %v535, %v536
    %v538 = vrot.slane %v537, 1
    %v539 = vadd.f32 %v537, %v538
    %v540 = vadd.f32 %v457, %v514
    %v541 = vadd.f32 %v458, %v524
    %v542 = vadd.f32 %v459, %v539
    %v543 = vld [vmem:[#allocation3 + $0x2d0] sm:$0xff]
    %v544 = vld [vmem:[#allocation3 + $0x2d8] sm:$0xff]
    %v545 = vld [vmem:[#allocation3 + $0x2e0] sm:$0xff]
    %v546 = vld [vmem:[#allocation3 + $0x2e8] sm:$0xff]
    %v547 = vld [vmem:[#allocation3 + $0x2f0] sm:$0xff]
    %v548 = vld [vmem:[#allocation3 + $0x2f8] sm:$0xff]
    %v549 = vld [vmem:[#allocation3 + $0x300] sm:$0xff]
    %v550 = vld [vmem:[#allocation3 + $0x308] sm:$0xff]
    %v551 = vld [vmem:[#allocation3 + $0x310] sm:$0xff]
    %v552 = vld [vmem:[#allocation3 + $0x318] sm:$0xff]
    %v553 = vld [vmem:[#allocation3 + $0x320] sm:$0xff]
    %v554 = vld [vmem:[#allocation3 + $0x328] sm:$0xff]
    %v555 = vld [vmem:[#allocation3 + $0x330] sm:$0xff]
    %v556 = vld [vmem:[#allocation3 + $0x338] sm:$0xff]
    %v557 = vld [vmem:[#allocation3 + $0x340] sm:$0xff]
    %v558 = vld [vmem:[#allocation6 + $0x2d0] sm:$0xff]
    %v559 = vld [vmem:[#allocation6 + $0x2d8] sm:$0xff]
    %v560 = vld [vmem:[#allocation6 + $0x2e0] sm:$0xff]
    %v561 = vld [vmem:[#allocation6 + $0x2e8] sm:$0xff]
    %v562 = vld [vmem:[#allocation6 + $0x2f0] sm:$0xff]
    %v563 = vld [vmem:[#allocation6 + $0x2f8] sm:$0xff]
    %v564 = vld [vmem:[#allocation6 + $0x300] sm:$0xff]
    %v565 = vld [vmem:[#allocation6 + $0x308] sm:$0xff]
    %v566 = vld [vmem:[#allocation6 + $0x310] sm:$0xff]
    %v567 = vld [vmem:[#allocation6 + $0x318] sm:$0xff]
    %v568 = vld [vmem:[#allocation6 + $0x320] sm:$0xff]
    %v569 = vld [vmem:[#allocation6 + $0x328] sm:$0xff]
    %v570 = vld [vmem:[#allocation6 + $0x330] sm:$0xff]
    %v571 = vld [vmem:[#allocation6 + $0x338] sm:$0xff]
    %v572 = vld [vmem:[#allocation6 + $0x340] sm:$0xff]
    %v573 = vmul.f32 %v543, %v558
    %v574 = vmul.f32 %v544, %v559
    %v575 = vmul.f32 %v545, %v560
    %v576 = vmul.f32 %v546, %v561
    %v577 = vmul.f32 %v547, %v562
    %v578 = vmul.f32 %v548, %v563
    %v579 = vmul.f32 %v549, %v564
    %v580 = vmul.f32 %v550, %v565
    %v581 = vmul.f32 %v551, %v566
    %v582 = vmul.f32 %v552, %v567
    %v583 = vmul.f32 %v553, %v568
    %v584 = vmul.f32 %v554, %v569
    %v585 = vmul.f32 %v555, %v570
    %v586 = vmul.f32 %v556, %v571
    %v587 = vmul.f32 %v557, %v572
    %v588 = vadd.f32 %v573, %v576
    %v589 = vadd.f32 %v588, %v579
    %v590 = vadd.f32 %v589, %v582
    %v591 = vadd.f32 %v590, %v585
    %v592 = vrot.slane %v591, 4
    %v593 = vadd.f32 %v591, %v592
    %v594 = vrot.slane %v593, 2
    %v595 = vadd.f32 %v593, %v594
    %v596 = vrot.slane %v595, 1
    %v597 = vadd.f32 %v595, %v596
    %v598 = vadd.f32 %v574, %v577
    %v599 = vadd.f32 %v598, %v580
    %v600 = vadd.f32 %v599, %v583
    %v601 = vadd.f32 %v600, %v586
    %v602 = vrot.slane %v601, 4
    %v603 = vadd.f32 %v601, %v602
    %v604 = vrot.slane %v603, 2
    %v605 = vadd.f32 %v603, %v604
    %v606 = vrot.slane %v605, 1
    %v607 = vadd.f32 %v605, %v606
    %v608 = vsel %vm109, %v575, 0.0
    %v609 = vsel %vm109, %v578, 0.0
    %v610 = vadd.f32 %v608, %v609
    %v611 = vsel %vm109, %v581, 0.0
    %v612 = vadd.f32 %v610, %v611
    %v613 = vsel %vm109, %v584, 0.0
    %v614 = vadd.f32 %v612, %v613
    %v615 = vsel %vm109, %v587, 0.0
    %v616 = vadd.f32 %v614, %v615
    %v617 = vrot.slane %v616, 4
    %v618 = vadd.f32 %v616, %v617
    %v619 = vrot.slane %v618, 2
    %v620 = vadd.f32 %v618, %v619
    %v621 = vrot.slane %v620, 1
    %v622 = vadd.f32 %v620, %v621
    %v623 = vadd.f32 %v540, %v597
    %v624 = vadd.f32 %v541, %v607
    %v625 = vadd.f32 %v542, %v622
    %v626 = vld [vmem:[#allocation3 + $0x348] sm:$0xff]
    %v627 = vld [vmem:[#allocation3 + $0x350] sm:$0xff]
    %v628 = vld [vmem:[#allocation3 + $0x358] sm:$0xff]
    %v629 = vld [vmem:[#allocation3 + $0x360] sm:$0xff]
    %v630 = vld [vmem:[#allocation3 + $0x368] sm:$0xff]
    %v631 = vld [vmem:[#allocation3 + $0x370] sm:$0xff]
    %v632 = vld [vmem:[#allocation3 + $0x378] sm:$0xf]
    %v633 = vld [vmem:[#allocation3 + $0x380] sm:$0xf]
    %v634 = vld [vmem:[#allocation3 + $0x388] sm:$0xf]
    %v635 = vld [vmem:[#allocation6 + $0x348] sm:$0xff]
    %v636 = vld [vmem:[#allocation6 + $0x350] sm:$0xff]
    %v637 = vld [vmem:[#allocation6 + $0x358] sm:$0xff]
    %v638 = vld [vmem:[#allocation6 + $0x360] sm:$0xff]
    %v639 = vld [vmem:[#allocation6 + $0x368] sm:$0xff]
    %v640 = vld [vmem:[#allocation6 + $0x370] sm:$0xff]
    %v641 = vld [vmem:[#allocation6 + $0x378] sm:$0xf]
    %v642 = vld [vmem:[#allocation6 + $0x380] sm:$0xf]
    %v643 = vld [vmem:[#allocation6 + $0x388] sm:$0xf]
    %v644 = vmul.f32 %v626, %v635
    %v645 = vmul.f32 %v627, %v636
    %v646 = vmul.f32 %v628, %v637
    %v647 = vmul.f32 %v629, %v638
    %v648 = vmul.f32 %v630, %v639
    %v649 = vmul.f32 %v631, %v640
    %v650 = vmul.f32 %v632, %v641
    %v651 = vmul.f32 %v633, %v642
    %v652 = vmul.f32 %v634, %v643
    %v653 = vadd.f32 %v644, %v647
    %vm654 = vcmask 1043456
    %v655 = vsel %vm654, %v650, 0.0
    %v656 = vadd.f32 %v653, %v655
    %v657 = vrot.slane %v656, 4
    %v658 = vadd.f32 %v656, %v657
    %v659 = vrot.slane %v658, 2
    %v660 = vadd.f32 %v658, %v659
    %v661 = vrot.slane %v660, 1
    %v662 = vadd.f32 %v660, %v661
    %v663 = vadd.f32 %v645, %v648
    %v664 = vsel %vm654, %v651, 0.0
    %v665 = vadd.f32 %v663, %v664
    %v666 = vrot.slane %v665, 4
    %v667 = vadd.f32 %v665, %v666
    %v668 = vrot.slane %v667, 2
    %v669 = vadd.f32 %v667, %v668
    %v670 = vrot.slane %v669, 1
    %v671 = vadd.f32 %v669, %v670
    %v672 = vsel %vm109, %v646, 0.0
    %v673 = vsel %vm109, %v649, 0.0
    %v674 = vadd.f32 %v672, %v673
    %vm675 = vcmask 355328
    %v676 = vsel %vm675, %v652, 0.0
    %v677 = vadd.f32 %v674, %v676
    %v678 = vrot.slane %v677, 4
    %v679 = vadd.f32 %v677, %v678
    %v680 = vrot.slane %v679, 2
    %v681 = vadd.f32 %v679, %v680
    %v682 = vrot.slane %v681, 1
    %v683 = vadd.f32 %v681, %v682
    %v684 = vadd.f32 %v623, %v662
    %v685 = vadd.f32 %v624, %v671
    %v686 = vadd.f32 %v625, %v683
    %s687 = scalar_lea.vmem [#allocation3], 912
    %v688 = vld [vmem:[%s687] sm:$0xff]
    %v689 = vld [vmem:[%s687 + $0x8] sm:$0xff]
    %v690 = vld [vmem:[%s687 + $0x10] sm:$0xff]
    %v691 = vld [vmem:[%s687 + $0x18] sm:$0xff]
    %v692 = vld [vmem:[%s687 + $0x20] sm:$0xff]
    %v693 = vld [vmem:[%s687 + $0x28] sm:$0xff]
    %v694 = vld [vmem:[%s687 + $0x30] sm:$0xff]
    %v695 = vld [vmem:[%s687 + $0x38] sm:$0xff]
    %v696 = vld [vmem:[%s687 + $0x40] sm:$0xff]
    %v697 = vld [vmem:[%s687 + $0x48] sm:$0xff]
    %v698 = vld [vmem:[%s687 + $0x50] sm:$0xff]
    %v699 = vld [vmem:[%s687 + $0x58] sm:$0xff]
    %v700 = vld [vmem:[%s687 + $0x60] sm:$0xff]
    %v701 = vld [vmem:[%s687 + $0x68] sm:$0xff]
    %v702 = vld [vmem:[%s687 + $0x70] sm:$0xff]
    %s703 = scalar_lea.vmem [#allocation6], 912
    %v704 = vld [vmem:[%s703] sm:$0xff]
    %v705 = vld [vmem:[%s703 + $0x8] sm:$0xff]
    %v706 = vld [vmem:[%s703 + $0x10] sm:$0xff]
    %v707 = vld [vmem:[%s703 + $0x18] sm:$0xff]
    %v708 = vld [vmem:[%s703 + $0x20] sm:$0xff]
    %v709 = vld [vmem:[%s703 + $0x28] sm:$0xff]
    %v710 = vld [vmem:[%s703 + $0x30] sm:$0xff]
    %v711 = vld [vmem:[%s703 + $0x38] sm:$0xff]
    %v712 = vld [vmem:[%s703 + $0x40] sm:$0xff]
    %v713 = vld [vmem:[%s703 + $0x48] sm:$0xff]
    %v714 = vld [vmem:[%s703 + $0x50] sm:$0xff]
    %v715 = vld [vmem:[%s703 + $0x58] sm:$0xff]
    %v716 = vld [vmem:[%s703 + $0x60] sm:$0xff]
    %v717 = vld [vmem:[%s703 + $0x68] sm:$0xff]
    %v718 = vld [vmem:[%s703 + $0x70] sm:$0xff]
    %v719 = vmul.f32 %v688, %v704
    %v720 = vmul.f32 %v689, %v705
    %v721 = vmul.f32 %v690, %v706
    %v722 = vmul.f32 %v691, %v707
    %v723 = vmul.f32 %v692, %v708
    %v724 = vmul.f32 %v693, %v709
    %v725 = vmul.f32 %v694, %v710
    %v726 = vmul.f32 %v695, %v711
    %v727 = vmul.f32 %v696, %v712
    %v728 = vmul.f32 %v697, %v713
    %v729 = vmul.f32 %v698, %v714
    %v730 = vmul.f32 %v699, %v715
    %v731 = vmul.f32 %v700, %v716
    %v732 = vmul.f32 %v701, %v717
    %v733 = vmul.f32 %v702, %v718
    %v734 = vadd.f32 %v719, %v722
    %v735 = vadd.f32 %v734, %v725
    %v736 = vadd.f32 %v735, %v728
    %v737 = vadd.f32 %v736, %v731
    %v738 = vrot.slane %v737, 4
    %v739 = vadd.f32 %v737, %v738
    %v740 = vrot.slane %v739, 2
    %v741 = vadd.f32 %v739, %v740
    %v742 = vrot.slane %v741, 1
    %v743 = vadd.f32 %v741, %v742
    %v744 = vadd.f32 %v720, %v723
    %v745 = vadd.f32 %v744, %v726
    %v746 = vadd.f32 %v745, %v729
    %v747 = vadd.f32 %v746, %v732
    %v748 = vrot.slane %v747, 4
    %v749 = vadd.f32 %v747, %v748
    %v750 = vrot.slane %v749, 2
    %v751 = vadd.f32 %v749, %v750
    %v752 = vrot.slane %v751, 1
    %v753 = vadd.f32 %v751, %v752
    %v754 = vsel %vm109, %v721, 0.0
    %v755 = vsel %vm109, %v724, 0.0
    %v756 = vadd.f32 %v754, %v755
    %v757 = vsel %vm109, %v727, 0.0
    %v758 = vadd.f32 %v756, %v757
    %v759 = vsel %vm109, %v730, 0.0
    %v760 = vadd.f32 %v758, %v759
    %v761 = vsel %vm109, %v733, 0.0
    %v762 = vadd.f32 %v760, %v761
    %v763 = vrot.slane %v762, 4
    %v764 = vadd.f32 %v762, %v763
    %v765 = vrot.slane %v764, 2
    %v766 = vadd.f32 %v764, %v765
    %v767 = vrot.slane %v766, 1
    %v768 = vadd.f32 %v766, %v767
    %v769 = vadd.f32 %v684, %v743
    %v770 = vadd.f32 %v685, %v753
    %v771 = vadd.f32 %v686, %v768
    %v772 = vld [vmem:[%s687 + $0x78] sm:$0xff]
    %v773 = vld [vmem:[%s687 + $0x80] sm:$0xff]
    %v774 = vld [vmem:[%s687 + $0x88] sm:$0xff]
    %v775 = vld [vmem:[%s687 + $0x90] sm:$0xff]
    %v776 = vld [vmem:[%s687 + $0x98] sm:$0xff]
    %v777 = vld [vmem:[%s687 + $0xa0] sm:$0xff]
    %v778 = vld [vmem:[%s687 + $0xa8] sm:$0xff]
    %v779 = vld [vmem:[%s687 + $0xb0] sm:$0xff]
    %v780 = vld [vmem:[%s687 + $0xb8] sm:$0xff]
    %v781 = vld [vmem:[%s687 + $0xc0] sm:$0xff]
    %v782 = vld [vmem:[%s687 + $0xc8] sm:$0xff]
    %v783 = vld [vmem:[%s687 + $0xd0] sm:$0xff]
    %v784 = vld [vmem:[%s687 + $0xd8] sm:$0xff]
    %v785 = vld [vmem:[%s687 + $0xe0] sm:$0xff]
    %v786 = vld [vmem:[%s687 + $0xe8] sm:$0xff]
    %v787 = vld [vmem:[%s703 + $0x78] sm:$0xff]
    %v788 = vld [vmem:[%s703 + $0x80] sm:$0xff]
    %v789 = vld [vmem:[%s703 + $0x88] sm:$0xff]
    %v790 = vld [vmem:[%s703 + $0x90] sm:$0xff]
    %v791 = vld [vmem:[%s703 + $0x98] sm:$0xff]
    %v792 = vld [vmem:[%s703 + $0xa0] sm:$0xff]
    %v793 = vld [vmem:[%s703 + $0xa8] sm:$0xff]
    %v794 = vld [vmem:[%s703 + $0xb0] sm:$0xff]
    %v795 = vld [vmem:[%s703 + $0xb8] sm:$0xff]
    %v796 = vld [vmem:[%s703 + $0xc0] sm:$0xff]
    %v797 = vld [vmem:[%s703 + $0xc8] sm:$0xff]
    %v798 = vld [vmem:[%s703 + $0xd0] sm:$0xff]
    %v799 = vld [vmem:[%s703 + $0xd8] sm:$0xff]
    %v800 = vld [vmem:[%s703 + $0xe0] sm:$0xff]
    %v801 = vld [vmem:[%s703 + $0xe8] sm:$0xff]
    %v802 = vmul.f32 %v772, %v787
    %v803 = vmul.f32 %v773, %v788
    %v804 = vmul.f32 %v774, %v789
    %v805 = vmul.f32 %v775, %v790
    %v806 = vmul.f32 %v776, %v791
    %v807 = vmul.f32 %v777, %v792
    %v808 = vmul.f32 %v778, %v793
    %v809 = vmul.f32 %v779, %v794
    %v810 = vmul.f32 %v780, %v795
    %v811 = vmul.f32 %v781, %v796
    %v812 = vmul.f32 %v782, %v797
    %v813 = vmul.f32 %v783, %v798
    %v814 = vmul.f32 %v784, %v799
    %v815 = vmul.f32 %v785, %v800
    %v816 = vmul.f32 %v786, %v801
    %v817 = vadd.f32 %v802, %v805
    %v818 = vadd.f32 %v817, %v808
    %v819 = vadd.f32 %v818, %v811
    %v820 = vadd.f32 %v819, %v814
    %v821 = vrot.slane %v820, 4
    %v822 = vadd.f32 %v820, %v821
    %v823 = vrot.slane %v822, 2
    %v824 = vadd.f32 %v822, %v823
    %v825 = vrot.slane %v824, 1
    %v826 = vadd.f32 %v824, %v825
    %v827 = vadd.f32 %v803, %v806
    %v828 = vadd.f32 %v827, %v809
    %v829 = vadd.f32 %v828, %v812
    %v830 = vadd.f32 %v829, %v815
    %v831 = vrot.slane %v830, 4
    %v832 = vadd.f32 %v830, %v831
    %v833 = vrot.slane %v832, 2
    %v834 = vadd.f32 %v832, %v833
    %v835 = vrot.slane %v834, 1
    %v836 = vadd.f32 %v834, %v835
    %v837 = vsel %vm109, %v804, 0.0
    %v838 = vsel %vm109, %v807, 0.0
    %v839 = vadd.f32 %v837, %v838
    %v840 = vsel %vm109, %v810, 0.0
    %v841 = vadd.f32 %v839, %v840
    %v842 = vsel %vm109, %v813, 0.0
    %v843 = vadd.f32 %v841, %v842
    %v844 = vsel %vm109, %v816, 0.0
    %v845 = vadd.f32 %v843, %v844
    %v846 = vrot.slane %v845, 4
    %v847 = vadd.f32 %v845, %v846
    %v848 = vrot.slane %v847, 2
    %v849 = vadd.f32 %v847, %v848
    %v850 = vrot.slane %v849, 1
    %v851 = vadd.f32 %v849, %v850
    %v852 = vadd.f32 %v769, %v826
    %v853 = vadd.f32 %v770, %v836
    %v854 = vadd.f32 %v771, %v851
    %v855 = vld [vmem:[%s687 + $0xf0] sm:$0xff]
    %v856 = vld [vmem:[%s687 + $0xf8] sm:$0xff]
    %v857 = vld [vmem:[%s687 + $0x100] sm:$0xff]
    %v858 = vld [vmem:[%s687 + $0x108] sm:$0xff]
    %v859 = vld [vmem:[%s687 + $0x110] sm:$0xff]
    %v860 = vld [vmem:[%s687 + $0x118] sm:$0xff]
    %v861 = vld [vmem:[%s687 + $0x120] sm:$0xff]
    %v862 = vld [vmem:[%s687 + $0x128] sm:$0xff]
    %v863 = vld [vmem:[%s687 + $0x130] sm:$0xff]
    %v864 = vld [vmem:[%s687 + $0x138] sm:$0xff]
    %v865 = vld [vmem:[%s687 + $0x140] sm:$0xff]
    %v866 = vld [vmem:[%s687 + $0x148] sm:$0xff]
    %v867 = vld [vmem:[%s687 + $0x150] sm:$0xff]
    %v868 = vld [vmem:[%s687 + $0x158] sm:$0xff]
    %v869 = vld [vmem:[%s687 + $0x160] sm:$0xff]
    %v870 = vld [vmem:[%s703 + $0xf0] sm:$0xff]
    %v871 = vld [vmem:[%s703 + $0xf8] sm:$0xff]
    %v872 = vld [vmem:[%s703 + $0x100] sm:$0xff]
    %v873 = vld [vmem:[%s703 + $0x108] sm:$0xff]
    %v874 = vld [vmem:[%s703 + $0x110] sm:$0xff]
    %v875 = vld [vmem:[%s703 + $0x118] sm:$0xff]
    %v876 = vld [vmem:[%s703 + $0x120] sm:$0xff]
    %v877 = vld [vmem:[%s703 + $0x128] sm:$0xff]
    %v878 = vld [vmem:[%s703 + $0x130] sm:$0xff]
    %v879 = vld [vmem:[%s703 + $0x138] sm:$0xff]
    %v880 = vld [vmem:[%s703 + $0x140] sm:$0xff]
    %v881 = vld [vmem:[%s703 + $0x148] sm:$0xff]
    %v882 = vld [vmem:[%s703 + $0x150] sm:$0xff]
    %v883 = vld [vmem:[%s703 + $0x158] sm:$0xff]
    %v884 = vld [vmem:[%s703 + $0x160] sm:$0xff]
    %v885 = vmul.f32 %v855, %v870
    %v886 = vmul.f32 %v856, %v871
    %v887 = vmul.f32 %v857, %v872
    %v888 = vmul.f32 %v858, %v873
    %v889 = vmul.f32 %v859, %v874
    %v890 = vmul.f32 %v860, %v875
    %v891 = vmul.f32 %v861, %v876
    %v892 = vmul.f32 %v862, %v877
    %v893 = vmul.f32 %v863, %v878
    %v894 = vmul.f32 %v864, %v879
    %v895 = vmul.f32 %v865, %v880
    %v896 = vmul.f32 %v866, %v881
    %v897 = vmul.f32 %v867, %v882
    %v898 = vmul.f32 %v868, %v883
    %v899 = vmul.f32 %v869, %v884
    %v900 = vadd.f32 %v885, %v888
    %v901 = vadd.f32 %v900, %v891
    %v902 = vadd.f32 %v901, %v894
    %v903 = vadd.f32 %v902, %v897
    %v904 = vrot.slane %v903, 4
    %v905 = vadd.f32 %v903, %v904
    %v906 = vrot.slane %v905, 2
    %v907 = vadd.f32 %v905, %v906
    %v908 = vrot.slane %v907, 1
    %v909 = vadd.f32 %v907, %v908
    %v910 = vadd.f32 %v886, %v889
    %v911 = vadd.f32 %v910, %v892
    %v912 = vadd.f32 %v911, %v895
    %v913 = vadd.f32 %v912, %v898
    %v914 = vrot.slane %v913, 4
    %v915 = vadd.f32 %v913, %v914
    %v916 = vrot.slane %v915, 2
    %v917 = vadd.f32 %v915, %v916
    %v918 = vrot.slane %v917, 1
    %v919 = vadd.f32 %v917, %v918
    %v920 = vsel %vm109, %v887, 0.0
    %v921 = vsel %vm109, %v890, 0.0
    %v922 = vadd.f32 %v920, %v921
    %v923 = vsel %vm109, %v893, 0.0
    %v924 = vadd.f32 %v922, %v923
    %v925 = vsel %vm109, %v896, 0.0
    %v926 = vadd.f32 %v924, %v925
    %v927 = vsel %vm109, %v899, 0.0
    %v928 = vadd.f32 %v926, %v927
    %v929 = vrot.slane %v928, 4
    %v930 = vadd.f32 %v928, %v929
    %v931 = vrot.slane %v930, 2
    %v932 = vadd.f32 %v930, %v931
    %v933 = vrot.slane %v932, 1
    %v934 = vadd.f32 %v932, %v933
    %v935 = vadd.f32 %v852, %v909
    %v936 = vadd.f32 %v853, %v919
    %v937 = vadd.f32 %v854, %v934
    %v938 = vld [vmem:[%s687 + $0x168] sm:$0xff]
    %v939 = vld [vmem:[%s687 + $0x170] sm:$0xff]
    %v940 = vld [vmem:[%s687 + $0x178] sm:$0xff]
    %v941 = vld [vmem:[%s687 + $0x180] sm:$0xff]
    %v942 = vld [vmem:[%s687 + $0x188] sm:$0xff]
    %v943 = vld [vmem:[%s687 + $0x190] sm:$0xff]
    %v944 = vld [vmem:[%s687 + $0x198] sm:$0xff]
    %v945 = vld [vmem:[%s687 + $0x1a0] sm:$0xff]
    %v946 = vld [vmem:[%s687 + $0x1a8] sm:$0xff]
    %v947 = vld [vmem:[%s687 + $0x1b0] sm:$0xff]
    %v948 = vld [vmem:[%s687 + $0x1b8] sm:$0xff]
    %v949 = vld [vmem:[%s687 + $0x1c0] sm:$0xff]
    %v950 = vld [vmem:[%s687 + $0x1c8] sm:$0xff]
    %v951 = vld [vmem:[%s687 + $0x1d0] sm:$0xff]
    %v952 = vld [vmem:[%s687 + $0x1d8] sm:$0xff]
    %v953 = vld [vmem:[%s703 + $0x168] sm:$0xff]
    %v954 = vld [vmem:[%s703 + $0x170] sm:$0xff]
    %v955 = vld [vmem:[%s703 + $0x178] sm:$0xff]
    %v956 = vld [vmem:[%s703 + $0x180] sm:$0xff]
    %v957 = vld [vmem:[%s703 + $0x188] sm:$0xff]
    %v958 = vld [vmem:[%s703 + $0x190] sm:$0xff]
    %v959 = vld [vmem:[%s703 + $0x198] sm:$0xff]
    %v960 = vld [vmem:[%s703 + $0x1a0] sm:$0xff]
    %v961 = vld [vmem:[%s703 + $0x1a8] sm:$0xff]
    %v962 = vld [vmem:[%s703 + $0x1b0] sm:$0xff]
    %v963 = vld [vmem:[%s703 + $0x1b8] sm:$0xff]
    %v964 = vld [vmem:[%s703 + $0x1c0] sm:$0xff]
    %v965 = vld [vmem:[%s703 + $0x1c8] sm:$0xff]
    %v966 = vld [vmem:[%s703 + $0x1d0] sm:$0xff]
    %v967 = vld [vmem:[%s703 + $0x1d8] sm:$0xff]
    %v968 = vmul.f32 %v938, %v953
    %v969 = vmul.f32 %v939, %v954
    %v970 = vmul.f32 %v940, %v955
    %v971 = vmul.f32 %v941, %v956
    %v972 = vmul.f32 %v942, %v957
    %v973 = vmul.f32 %v943, %v958
    %v974 = vmul.f32 %v944, %v959
    %v975 = vmul.f32 %v945, %v960
    %v976 = vmul.f32 %v946, %v961
    %v977 = vmul.f32 %v947, %v962
    %v978 = vmul.f32 %v948, %v963
    %v979 = vmul.f32 %v949, %v964
    %v980 = vmul.f32 %v950, %v965
    %v981 = vmul.f32 %v951, %v966
    %v982 = vmul.f32 %v952, %v967
    %v983 = vadd.f32 %v968, %v971
    %v984 = vadd.f32 %v983, %v974
    %v985 = vadd.f32 %v984, %v977
    %v986 = vadd.f32 %v985, %v980
    %v987 = vrot.slane %v986, 4
    %v988 = vadd.f32 %v986, %v987
    %v989 = vrot.slane %v988, 2
    %v990 = vadd.f32 %v988, %v989
    %v991 = vrot.slane %v990, 1
    %v992 = vadd.f32 %v990, %v991
    %v993 = vadd.f32 %v969, %v972
    %v994 = vadd.f32 %v993, %v975
    %v995 = vadd.f32 %v994, %v978
    %v996 = vadd.f32 %v995, %v981
    %v997 = vrot.slane %v996, 4
    %v998 = vadd.f32 %v996, %v997
    %v999 = vrot.slane %v998, 2
    %v1000 = vadd.f32 %v998, %v999
    %v1001 = vrot.slane %v1000, 1
    %v1002 = vadd.f32 %v1000, %v1001
    %v1003 = vsel %vm109, %v970, 0.0
    %v1004 = vsel %vm109, %v973, 0.0
    %v1005 = vadd.f32 %v1003, %v1004
    %v1006 = vsel %vm109, %v976, 0.0
    %v1007 = vadd.f32 %v1005, %v1006
    %v1008 = vsel %vm109, %v979, 0.0
    %v1009 = vadd.f32 %v1007, %v1008
    %v1010 = vsel %vm109, %v982, 0.0
    %v1011 = vadd.f32 %v1009, %v1010
    %v1012 = vrot.slane %v1011, 4
    %v1013 = vadd.f32 %v1011, %v1012
    %v1014 = vrot.slane %v1013, 2
    %v1015 = vadd.f32 %v1013, %v1014
    %v1016 = vrot.slane %v1015, 1
    %v1017 = vadd.f32 %v1015, %v1016
    %v1018 = vadd.f32 %v935, %v992
    %v1019 = vadd.f32 %v936, %v1002
    %v1020 = vadd.f32 %v937, %v1017
    %v1021 = vld [vmem:[%s687 + $0x1e0] sm:$0xff]
    %v1022 = vld [vmem:[%s687 + $0x1e8] sm:$0xff]
    %v1023 = vld [vmem:[%s687 + $0x1f0] sm:$0xff]
    %v1024 = vld [vmem:[%s687 + $0x1f8] sm:$0xff]
    %v1025 = vld [vmem:[%s687 + $0x200] sm:$0xff]
    %v1026 = vld [vmem:[%s687 + $0x208] sm:$0xff]
    %v1027 = vld [vmem:[%s687 + $0x210] sm:$0xff]
    %v1028 = vld [vmem:[%s687 + $0x218] sm:$0xff]
    %v1029 = vld [vmem:[%s687 + $0x220] sm:$0xff]
    %v1030 = vld [vmem:[%s687 + $0x228] sm:$0xff]
    %v1031 = vld [vmem:[%s687 + $0x230] sm:$0xff]
    %v1032 = vld [vmem:[%s687 + $0x238] sm:$0xff]
    %v1033 = vld [vmem:[%s687 + $0x240] sm:$0xff]
    %v1034 = vld [vmem:[%s687 + $0x248] sm:$0xff]
    %v1035 = vld [vmem:[%s687 + $0x250] sm:$0xff]
    %v1036 = vld [vmem:[%s703 + $0x1e0] sm:$0xff]
    %v1037 = vld [vmem:[%s703 + $0x1e8] sm:$0xff]
    %v1038 = vld [vmem:[%s703 + $0x1f0] sm:$0xff]
    %v1039 = vld [vmem:[%s703 + $0x1f8] sm:$0xff]
    %v1040 = vld [vmem:[%s703 + $0x200] sm:$0xff]
    %v1041 = vld [vmem:[%s703 + $0x208] sm:$0xff]
    %v1042 = vld [vmem:[%s703 + $0x210] sm:$0xff]
    %v1043 = vld [vmem:[%s703 + $0x218] sm:$0xff]
    %v1044 = vld [vmem:[%s703 + $0x220] sm:$0xff]
    %v1045 = vld [vmem:[%s703 + $0x228] sm:$0xff]
    %v1046 = vld [vmem:[%s703 + $0x230] sm:$0xff]
    %v1047 = vld [vmem:[%s703 + $0x238] sm:$0xff]
    %v1048 = vld [vmem:[%s703 + $0x240] sm:$0xff]
    %v1049 = vld [vmem:[%s703 + $0x248] sm:$0xff]
    %v1050 = vld [vmem:[%s703 + $0x250] sm:$0xff]
    %v1051 = vmul.f32 %v1021, %v1036
    %v1052 = vmul.f32 %v1022, %v1037
    %v1053 = vmul.f32 %v1023, %v1038
    %v1054 = vmul.f32 %v1024, %v1039
    %v1055 = vmul.f32 %v1025, %v1040
    %v1056 = vmul.f32 %v1026, %v1041
    %v1057 = vmul.f32 %v1027, %v1042
    %v1058 = vmul.f32 %v1028, %v1043
    %v1059 = vmul.f32 %v1029, %v1044
    %v1060 = vmul.f32 %v1030, %v1045
    %v1061 = vmul.f32 %v1031, %v1046
    %v1062 = vmul.f32 %v1032, %v1047
    %v1063 = vmul.f32 %v1033, %v1048
    %v1064 = vmul.f32 %v1034, %v1049
    %v1065 = vmul.f32 %v1035, %v1050
    %v1066 = vadd.f32 %v1051, %v1054
    %v1067 = vadd.f32 %v1066, %v1057
    %v1068 = vadd.f32 %v1067, %v1060
    %v1069 = vadd.f32 %v1068, %v1063
    %v1070 = vrot.slane %v1069, 4
    %v1071 = vadd.f32 %v1069, %v1070
    %v1072 = vrot.slane %v1071, 2
    %v1073 = vadd.f32 %v1071, %v1072
    %v1074 = vrot.slane %v1073, 1
    %v1075 = vadd.f32 %v1073, %v1074
    %v1076 = vadd.f32 %v1052, %v1055
    %v1077 = vadd.f32 %v1076, %v1058
    %v1078 = vadd.f32 %v1077, %v1061
    %v1079 = vadd.f32 %v1078, %v1064
    %v1080 = vrot.slane %v1079, 4
    %v1081 = vadd.f32 %v1079, %v1080
    %v1082 = vrot.slane %v1081, 2
    %v1083 = vadd.f32 %v1081, %v1082
    %v1084 = vrot.slane %v1083, 1
    %v1085 = vadd.f32 %v1083, %v1084
    %v1086 = vsel %vm109, %v1053, 0.0
    %v1087 = vsel %vm109, %v1056, 0.0
    %v1088 = vadd.f32 %v1086, %v1087
    %v1089 = vsel %vm109, %v1059, 0.0
    %v1090 = vadd.f32 %v1088, %v1089
    %v1091 = vsel %vm109, %v1062, 0.0
    %v1092 = vadd.f32 %v1090, %v1091
    %v1093 = vsel %vm109, %v1065, 0.0
    %v1094 = vadd.f32 %v1092, %v1093
    %v1095 = vrot.slane %v1094, 4
    %v1096 = vadd.f32 %v1094, %v1095
    %v1097 = vrot.slane %v1096, 2
    %v1098 = vadd.f32 %v1096, %v1097
    %v1099 = vrot.slane %v1098, 1
    %v1100 = vadd.f32 %v1098, %v1099
    %v1101 = vadd.f32 %v1018, %v1075
    %v1102 = vadd.f32 %v1019, %v1085
    %v1103 = vadd.f32 %v1020, %v1100
    %v1104 = vld [vmem:[%s687 + $0x258] sm:$0xff]
    %v1105 = vld [vmem:[%s687 + $0x260] sm:$0xff]
    %v1106 = vld [vmem:[%s687 + $0x268] sm:$0xff]
    %v1107 = vld [vmem:[%s687 + $0x270] sm:$0xff]
    %v1108 = vld [vmem:[%s687 + $0x278] sm:$0xff]
    %v1109 = vld [vmem:[%s687 + $0x280] sm:$0xff]
    %v1110 = vld [vmem:[%s687 + $0x288] sm:$0xff]
    %v1111 = vld [vmem:[%s687 + $0x290] sm:$0xff]
    %v1112 = vld [vmem:[%s687 + $0x298] sm:$0xff]
    %v1113 = vld [vmem:[%s687 + $0x2a0] sm:$0xff]
    %v1114 = vld [vmem:[%s687 + $0x2a8] sm:$0xff]
    %v1115 = vld [vmem:[%s687 + $0x2b0] sm:$0xff]
    %v1116 = vld [vmem:[%s687 + $0x2b8] sm:$0xff]
    %v1117 = vld [vmem:[%s687 + $0x2c0] sm:$0xff]
    %v1118 = vld [vmem:[%s687 + $0x2c8] sm:$0xff]
    %v1119 = vld [vmem:[%s703 + $0x258] sm:$0xff]
    %v1120 = vld [vmem:[%s703 + $0x260] sm:$0xff]
    %v1121 = vld [vmem:[%s703 + $0x268] sm:$0xff]
    %v1122 = vld [vmem:[%s703 + $0x270] sm:$0xff]
    %v1123 = vld [vmem:[%s703 + $0x278] sm:$0xff]
    %v1124 = vld [vmem:[%s703 + $0x280] sm:$0xff]
    %v1125 = vld [vmem:[%s703 + $0x288] sm:$0xff]
    %v1126 = vld [vmem:[%s703 + $0x290] sm:$0xff]
    %v1127 = vld [vmem:[%s703 + $0x298] sm:$0xff]
    %v1128 = vld [vmem:[%s703 + $0x2a0] sm:$0xff]
    %v1129 = vld [vmem:[%s703 + $0x2a8] sm:$0xff]
    %v1130 = vld [vmem:[%s703 + $0x2b0] sm:$0xff]
    %v1131 = vld [vmem:[%s703 + $0x2b8] sm:$0xff]
    %v1132 = vld [vmem:[%s703 + $0x2c0] sm:$0xff]
    %v1133 = vld [vmem:[%s703 + $0x2c8] sm:$0xff]
    %v1134 = vmul.f32 %v1104, %v1119
    %v1135 = vmul.f32 %v1105, %v1120
    %v1136 = vmul.f32 %v1106, %v1121
    %v1137 = vmul.f32 %v1107, %v1122
    %v1138 = vmul.f32 %v1108, %v1123
    %v1139 = vmul.f32 %v1109, %v1124
    %v1140 = vmul.f32 %v1110, %v1125
    %v1141 = vmul.f32 %v1111, %v1126
    %v1142 = vmul.f32 %v1112, %v1127
    %v1143 = vmul.f32 %v1113, %v1128
    %v1144 = vmul.f32 %v1114, %v1129
    %v1145 = vmul.f32 %v1115, %v1130
    %v1146 = vmul.f32 %v1116, %v1131
    %v1147 = vmul.f32 %v1117, %v1132
    %v1148 = vmul.f32 %v1118, %v1133
    %v1149 = vadd.f32 %v1134, %v1137
    %v1150 = vadd.f32 %v1149, %v1140
    %v1151 = vadd.f32 %v1150, %v1143
    %v1152 = vadd.f32 %v1151, %v1146
    %v1153 = vrot.slane %v1152, 4
    %v1154 = vadd.f32 %v1152, %v1153
    %v1155 = vrot.slane %v1154, 2
    %v1156 = vadd.f32 %v1154, %v1155
    %v1157 = vrot.slane %v1156, 1
    %v1158 = vadd.f32 %v1156, %v1157
    %v1159 = vadd.f32 %v1135, %v1138
    %v1160 = vadd.f32 %v1159, %v1141
    %v1161 = vadd.f32 %v1160, %v1144
    %v1162 = vadd.f32 %v1161, %v1147
    %v1163 = vrot.slane %v1162, 4
    %v1164 = vadd.f32 %v1162, %v1163
    %v1165 = vrot.slane %v1164, 2
    %v1166 = vadd.f32 %v1164, %v1165
    %v1167 = vrot.slane %v1166, 1
    %v1168 = vadd.f32 %v1166, %v1167
    %v1169 = vsel %vm109, %v1136, 0.0
    %v1170 = vsel %vm109, %v1139, 0.0
    %v1171 = vadd.f32 %v1169, %v1170
    %v1172 = vsel %vm109, %v1142, 0.0
    %v1173 = vadd.f32 %v1171, %v1172
    %v1174 = vsel %vm109, %v1145, 0.0
    %v1175 = vadd.f32 %v1173, %v1174
    %v1176 = vsel %vm109, %v1148, 0.0
    %v1177 = vadd.f32 %v1175, %v1176
    %v1178 = vrot.slane %v1177, 4
    %v1179 = vadd.f32 %v1177, %v1178
    %v1180 = vrot.slane %v1179, 2
    %v1181 = vadd.f32 %v1179, %v1180
    %v1182 = vrot.slane %v1181, 1
    %v1183 = vadd.f32 %v1181, %v1182
    %v1184 = vadd.f32 %v1101, %v1158
    %v1185 = vadd.f32 %v1102, %v1168
    %v1186 = vadd.f32 %v1103, %v1183
    %v1187 = vld [vmem:[%s687 + $0x2d0] sm:$0xff]
    %v1188 = vld [vmem:[%s687 + $0x2d8] sm:$0xff]
    %v1189 = vld [vmem:[%s687 + $0x2e0] sm:$0xff]
    %v1190 = vld [vmem:[%s687 + $0x2e8] sm:$0xff]
    %v1191 = vld [vmem:[%s687 + $0x2f0] sm:$0xff]
    %v1192 = vld [vmem:[%s687 + $0x2f8] sm:$0xff]
    %v1193 = vld [vmem:[%s687 + $0x300] sm:$0xff]
    %v1194 = vld [vmem:[%s687 + $0x308] sm:$0xff]
    %v1195 = vld [vmem:[%s687 + $0x310] sm:$0xff]
    %v1196 = vld [vmem:[%s687 + $0x318] sm:$0xff]
    %v1197 = vld [vmem:[%s687 + $0x320] sm:$0xff]
    %v1198 = vld [vmem:[%s687 + $0x328] sm:$0xff]
    %v1199 = vld [vmem:[%s687 + $0x330] sm:$0xff]
    %v1200 = vld [vmem:[%s687 + $0x338] sm:$0xff]
    %v1201 = vld [vmem:[%s687 + $0x340] sm:$0xff]
    %v1202 = vld [vmem:[%s703 + $0x2d0] sm:$0xff]
    %v1203 = vld [vmem:[%s703 + $0x2d8] sm:$0xff]
    %v1204 = vld [vmem:[%s703 + $0x2e0] sm:$0xff]
    %v1205 = vld [vmem:[%s703 + $0x2e8] sm:$0xff]
    %v1206 = vld [vmem:[%s703 + $0x2f0] sm:$0xff]
    %v1207 = vld [vmem:[%s703 + $0x2f8] sm:$0xff]
    %v1208 = vld [vmem:[%s703 + $0x300] sm:$0xff]
    %v1209 = vld [vmem:[%s703 + $0x308] sm:$0xff]
    %v1210 = vld [vmem:[%s703 + $0x310] sm:$0xff]
    %v1211 = vld [vmem:[%s703 + $0x318] sm:$0xff]
    %v1212 = vld [vmem:[%s703 + $0x320] sm:$0xff]
    %v1213 = vld [vmem:[%s703 + $0x328] sm:$0xff]
    %v1214 = vld [vmem:[%s703 + $0x330] sm:$0xff]
    %v1215 = vld [vmem:[%s703 + $0x338] sm:$0xff]
    %v1216 = vld [vmem:[%s703 + $0x340] sm:$0xff]
    %v1217 = vmul.f32 %v1187, %v1202
    %v1218 = vmul.f32 %v1188, %v1203
    %v1219 = vmul.f32 %v1189, %v1204
    %v1220 = vmul.f32 %v1190, %v1205
    %v1221 = vmul.f32 %v1191, %v1206
    %v1222 = vmul.f32 %v1192, %v1207
    %v1223 = vmul.f32 %v1193, %v1208
    %v1224 = vmul.f32 %v1194, %v1209
    %v1225 = vmul.f32 %v1195, %v1210
    %v1226 = vmul.f32 %v1196, %v1211
    %v1227 = vmul.f32 %v1197, %v1212
    %v1228 = vmul.f32 %v1198, %v1213
    %v1229 = vmul.f32 %v1199, %v1214
    %v1230 = vmul.f32 %v1200, %v1215
    %v1231 = vmul.f32 %v1201, %v1216
    %v1232 = vadd.f32 %v1217, %v1220
    %v1233 = vadd.f32 %v1232, %v1223
    %v1234 = vadd.f32 %v1233, %v1226
    %v1235 = vadd.f32 %v1234, %v1229
    %v1236 = vrot.slane %v1235, 4
    %v1237 = vadd.f32 %v1235, %v1236
    %v1238 = vrot.slane %v1237, 2
    %v1239 = vadd.f32 %v1237, %v1238
    %v1240 = vrot.slane %v1239, 1
    %v1241 = vadd.f32 %v1239, %v1240
    %v1242 = vadd.f32 %v1218, %v1221
    %v1243 = vadd.f32 %v1242, %v1224
    %v1244 = vadd.f32 %v1243, %v1227
    %v1245 = vadd.f32 %v1244, %v1230
    %v1246 = vrot.slane %v1245, 4
    %v1247 = vadd.f32 %v1245, %v1246
    %v1248 = vrot.slane %v1247, 2
    %v1249 = vadd.f32 %v1247, %v1248
    %v1250 = vrot.slane %v1249, 1
    %v1251 = vadd.f32 %v1249, %v1250
    %v1252 = vsel %vm109, %v1219, 0.0
    %v1253 = vsel %vm109, %v1222, 0.0
    %v1254 = vadd.f32 %v1252, %v1253
    %v1255 = vsel %vm109, %v1225, 0.0
    %v1256 = vadd.f32 %v1254, %v1255
    %v1257 = vsel %vm109, %v1228, 0.0
    %v1258 = vadd.f32 %v1256, %v1257
    %v1259 = vsel %vm109, %v1231, 0.0
    %v1260 = vadd.f32 %v1258, %v1259
    %v1261 = vrot.slane %v1260, 4
    %v1262 = vadd.f32 %v1260, %v1261
    %v1263 = vrot.slane %v1262, 2
    %v1264 = vadd.f32 %v1262, %v1263
    %v1265 = vrot.slane %v1264, 1
    %v1266 = vadd.f32 %v1264, %v1265
    %v1267 = vadd.f32 %v1184, %v1241
    %v1268 = vadd.f32 %v1185, %v1251
    %v1269 = vadd.f32 %v1186, %v1266
    %v1270 = vld [vmem:[%s687 + $0x348] sm:$0xff]
    %v1271 = vld [vmem:[%s687 + $0x350] sm:$0xff]
    %v1272 = vld [vmem:[%s687 + $0x358] sm:$0xff]
    %v1273 = vld [vmem:[%s687 + $0x360] sm:$0xff]
    %v1274 = vld [vmem:[%s687 + $0x368] sm:$0xff]
    %v1275 = vld [vmem:[%s687 + $0x370] sm:$0xff]
    %v1276 = vld [vmem:[%s687 + $0x378] sm:$0xf]
    %v1277 = vld [vmem:[%s687 + $0x380] sm:$0xf]
    %v1278 = vld [vmem:[%s687 + $0x388] sm:$0xf]
    %v1279 = vld [vmem:[%s703 + $0x348] sm:$0xff]
    %v1280 = vld [vmem:[%s703 + $0x350] sm:$0xff]
    %v1281 = vld [vmem:[%s703 + $0x358] sm:$0xff]
    %v1282 = vld [vmem:[%s703 + $0x360] sm:$0xff]
    %v1283 = vld [vmem:[%s703 + $0x368] sm:$0xff]
    %v1284 = vld [vmem:[%s703 + $0x370] sm:$0xff]
    %v1285 = vld [vmem:[%s703 + $0x378] sm:$0xf]
    %v1286 = vld [vmem:[%s703 + $0x380] sm:$0xf]
    %v1287 = vld [vmem:[%s703 + $0x388] sm:$0xf]
    %v1288 = vmul.f32 %v1270, %v1279
    %v1289 = vmul.f32 %v1271, %v1280
    %v1290 = vmul.f32 %v1272, %v1281
    %v1291 = vmul.f32 %v1273, %v1282
    %v1292 = vmul.f32 %v1274, %v1283
    %v1293 = vmul.f32 %v1275, %v1284
    %v1294 = vmul.f32 %v1276, %v1285
    %v1295 = vmul.f32 %v1277, %v1286
    %v1296 = vmul.f32 %v1278, %v1287
    %v1297 = vadd.f32 %v1288, %v1291
    %v1298 = vsel %vm654, %v1294, 0.0
    %v1299 = vadd.f32 %v1297, %v1298
    %v1300 = vrot.slane %v1299, 4
    %v1301 = vadd.f32 %v1299, %v1300
    %v1302 = vrot.slane %v1301, 2
    %v1303 = vadd.f32 %v1301, %v1302
    %v1304 = vrot.slane %v1303, 1
    %v1305 = vadd.f32 %v1303, %v1304
    %v1306 = vadd.f32 %v1289, %v1292
    %v1307 = vsel %vm654, %v1295, 0.0
    %v1308 = vadd.f32 %v1306, %v1307
    %v1309 = vrot.slane %v1308, 4
    %v1310 = vadd.f32 %v1308, %v1309
    %v1311 = vrot.slane %v1310, 2
    %v1312 = vadd.f32 %v1310, %v1311
    %v1313 = vrot.slane %v1312, 1
    %v1314 = vadd.f32 %v1312, %v1313
    %v1315 = vsel %vm109, %v1290, 0.0
    %v1316 = vsel %vm109, %v1293, 0.0
    %v1317 = vadd.f32 %v1315, %v1316
    %v1318 = vsel %vm675, %v1296, 0.0
    %v1319 = vadd.f32 %v1317, %v1318
    %v1320 = vrot.slane %v1319, 4
    %v1321 = vadd.f32 %v1319, %v1320
    %v1322 = vrot.slane %v1321, 2
    %v1323 = vadd.f32 %v1321, %v1322
    %v1324 = vrot.slane %v1323, 1
    %v1325 = vadd.f32 %v1323, %v1324
    %v1326 = vadd.f32 %v1267, %v1305
    %v1327 = vadd.f32 %v1268, %v1314
    %v1328 = vadd.f32 %v1269, %v1325
    %s1329 = scalar_lea.vmem [#allocation3], 1824
    %v1330 = vld [vmem:[%s1329] sm:$0xff]
    %v1331 = vld [vmem:[%s1329 + $0x8] sm:$0xff]
    %v1332 = vld [vmem:[%s1329 + $0x10] sm:$0xff]
    %v1333 = vld [vmem:[%s1329 + $0x18] sm:$0xff]
    %v1334 = vld [vmem:[%s1329 + $0x20] sm:$0xff]
    %v1335 = vld [vmem:[%s1329 + $0x28] sm:$0xff]
    %v1336 = vld [vmem:[%s1329 + $0x30] sm:$0xff]
    %v1337 = vld [vmem:[%s1329 + $0x38] sm:$0xff]
    %v1338 = vld [vmem:[%s1329 + $0x40] sm:$0xff]
    %v1339 = vld [vmem:[%s1329 + $0x48] sm:$0xff]
    %v1340 = vld [vmem:[%s1329 + $0x50] sm:$0xff]
    %v1341 = vld [vmem:[%s1329 + $0x58] sm:$0xff]
    %v1342 = vld [vmem:[%s1329 + $0x60] sm:$0xff]
    %v1343 = vld [vmem:[%s1329 + $0x68] sm:$0xff]
    %v1344 = vld [vmem:[%s1329 + $0x70] sm:$0xff]
    %s1345 = scalar_lea.vmem [#allocation6], 1824
    %v1346 = vld [vmem:[%s1345] sm:$0xff]
    %v1347 = vld [vmem:[%s1345 + $0x8] sm:$0xff]
    %v1348 = vld [vmem:[%s1345 + $0x10] sm:$0xff]
    %v1349 = vld [vmem:[%s1345 + $0x18] sm:$0xff]
    %v1350 = vld [vmem:[%s1345 + $0x20] sm:$0xff]
    %v1351 = vld [vmem:[%s1345 + $0x28] sm:$0xff]
    %v1352 = vld [vmem:[%s1345 + $0x30] sm:$0xff]
    %v1353 = vld [vmem:[%s1345 + $0x38] sm:$0xff]
    %v1354 = vld [vmem:[%s1345 + $0x40] sm:$0xff]
    %v1355 = vld [vmem:[%s1345 + $0x48] sm:$0xff]
    %v1356 = vld [vmem:[%s1345 + $0x50] sm:$0xff]
    %v1357 = vld [vmem:[%s1345 + $0x58] sm:$0xff]
    %v1358 = vld [vmem:[%s1345 + $0x60] sm:$0xff]
    %v1359 = vld [vmem:[%s1345 + $0x68] sm:$0xff]
    %v1360 = vld [vmem:[%s1345 + $0x70] sm:$0xff]
    %v1361 = vmul.f32 %v1330, %v1346
    %v1362 = vmul.f32 %v1331, %v1347
    %v1363 = vmul.f32 %v1332, %v1348
    %v1364 = vmul.f32 %v1333, %v1349
    %v1365 = vmul.f32 %v1334, %v1350
    %v1366 = vmul.f32 %v1335, %v1351
    %v1367 = vmul.f32 %v1336, %v1352
    %v1368 = vmul.f32 %v1337, %v1353
    %v1369 = vmul.f32 %v1338, %v1354
    %v1370 = vmul.f32 %v1339, %v1355
    %v1371 = vmul.f32 %v1340, %v1356
    %v1372 = vmul.f32 %v1341, %v1357
    %v1373 = vmul.f32 %v1342, %v1358
    %v1374 = vmul.f32 %v1343, %v1359
    %v1375 = vmul.f32 %v1344, %v1360
    %v1376 = vadd.f32 %v1361, %v1364
    %v1377 = vadd.f32 %v1376, %v1367
    %v1378 = vadd.f32 %v1377, %v1370
    %v1379 = vadd.f32 %v1378, %v1373
    %v1380 = vrot.slane %v1379, 4
    %v1381 = vadd.f32 %v1379, %v1380
    %v1382 = vrot.slane %v1381, 2
    %v1383 = vadd.f32 %v1381, %v1382
    %v1384 = vrot.slane %v1383, 1
    %v1385 = vadd.f32 %v1383, %v1384
    %v1386 = vadd.f32 %v1362, %v1365
    %v1387 = vadd.f32 %v1386, %v1368
    %v1388 = vadd.f32 %v1387, %v1371
    %v1389 = vadd.f32 %v1388, %v1374
    %v1390 = vrot.slane %v1389, 4
    %v1391 = vadd.f32 %v1389, %v1390
    %v1392 = vrot.slane %v1391, 2
    %v1393 = vadd.f32 %v1391, %v1392
    %v1394 = vrot.slane %v1393, 1
    %v1395 = vadd.f32 %v1393, %v1394
    %v1396 = vsel %vm109, %v1363, 0.0
    %v1397 = vsel %vm109, %v1366, 0.0
    %v1398 = vadd.f32 %v1396, %v1397
    %v1399 = vsel %vm109, %v1369, 0.0
    %v1400 = vadd.f32 %v1398, %v1399
    %v1401 = vsel %vm109, %v1372, 0.0
    %v1402 = vadd.f32 %v1400, %v1401
    %v1403 = vsel %vm109, %v1375, 0.0
    %v1404 = vadd.f32 %v1402, %v1403
    %v1405 = vrot.slane %v1404, 4
    %v1406 = vadd.f32 %v1404, %v1405
    %v1407 = vrot.slane %v1406, 2
    %v1408 = vadd.f32 %v1406, %v1407
    %v1409 = vrot.slane %v1408, 1
    %v1410 = vadd.f32 %v1408, %v1409
    %v1411 = vadd.f32 %v1326, %v1385
    %v1412 = vadd.f32 %v1327, %v1395
    %v1413 = vadd.f32 %v1328, %v1410
    %v1414 = vld [vmem:[%s1329 + $0x78] sm:$0xff]
    %v1415 = vld [vmem:[%s1329 + $0x80] sm:$0xff]
    %v1416 = vld [vmem:[%s1329 + $0x88] sm:$0xff]
    %v1417 = vld [vmem:[%s1329 + $0x90] sm:$0xff]
    %v1418 = vld [vmem:[%s1329 + $0x98] sm:$0xff]
    %v1419 = vld [vmem:[%s1329 + $0xa0] sm:$0xff]
    %v1420 = vld [vmem:[%s1329 + $0xa8] sm:$0xff]
    %v1421 = vld [vmem:[%s1329 + $0xb0] sm:$0xff]
    %v1422 = vld [vmem:[%s1329 + $0xb8] sm:$0xff]
    %v1423 = vld [vmem:[%s1329 + $0xc0] sm:$0xff]
    %v1424 = vld [vmem:[%s1329 + $0xc8] sm:$0xff]
    %v1425 = vld [vmem:[%s1329 + $0xd0] sm:$0xff]
    %v1426 = vld [vmem:[%s1329 + $0xd8] sm:$0xff]
    %v1427 = vld [vmem:[%s1329 + $0xe0] sm:$0xff]
    %v1428 = vld [vmem:[%s1329 + $0xe8] sm:$0xff]
    %v1429 = vld [vmem:[%s1345 + $0x78] sm:$0xff]
    %v1430 = vld [vmem:[%s1345 + $0x80] sm:$0xff]
    %v1431 = vld [vmem:[%s1345 + $0x88] sm:$0xff]
    %v1432 = vld [vmem:[%s1345 + $0x90] sm:$0xff]
    %v1433 = vld [vmem:[%s1345 + $0x98] sm:$0xff]
    %v1434 = vld [vmem:[%s1345 + $0xa0] sm:$0xff]
    %v1435 = vld [vmem:[%s1345 + $0xa8] sm:$0xff]
    %v1436 = vld [vmem:[%s1345 + $0xb0] sm:$0xff]
    %v1437 = vld [vmem:[%s1345 + $0xb8] sm:$0xff]
    %v1438 = vld [vmem:[%s1345 + $0xc0] sm:$0xff]
    %v1439 = vld [vmem:[%s1345 + $0xc8] sm:$0xff]
    %v1440 = vld [vmem:[%s1345 + $0xd0] sm:$0xff]
    %v1441 = vld [vmem:[%s1345 + $0xd8] sm:$0xff]
    %v1442 = vld [vmem:[%s1345 + $0xe0] sm:$0xff]
    %v1443 = vld [vmem:[%s1345 + $0xe8] sm:$0xff]
    %v1444 = vmul.f32 %v1414, %v1429
    %v1445 = vmul.f32 %v1415, %v1430
    %v1446 = vmul.f32 %v1416, %v1431
    %v1447 = vmul.f32 %v1417, %v1432
    %v1448 = vmul.f32 %v1418, %v1433
    %v1449 = vmul.f32 %v1419, %v1434
    %v1450 = vmul.f32 %v1420, %v1435
    %v1451 = vmul.f32 %v1421, %v1436
    %v1452 = vmul.f32 %v1422, %v1437
    %v1453 = vmul.f32 %v1423, %v1438
    %v1454 = vmul.f32 %v1424, %v1439
    %v1455 = vmul.f32 %v1425, %v1440
    %v1456 = vmul.f32 %v1426, %v1441
    %v1457 = vmul.f32 %v1427, %v1442
    %v1458 = vmul.f32 %v1428, %v1443
    %v1459 = vadd.f32 %v1444, %v1447
    %v1460 = vadd.f32 %v1459, %v1450
    %v1461 = vadd.f32 %v1460, %v1453
    %v1462 = vadd.f32 %v1461, %v1456
    %v1463 = vrot.slane %v1462, 4
    %v1464 = vadd.f32 %v1462, %v1463
    %v1465 = vrot.slane %v1464, 2
    %v1466 = vadd.f32 %v1464, %v1465
    %v1467 = vrot.slane %v1466, 1
    %v1468 = vadd.f32 %v1466, %v1467
    %v1469 = vadd.f32 %v1445, %v1448
    %v1470 = vadd.f32 %v1469, %v1451
    %v1471 = vadd.f32 %v1470, %v1454
    %v1472 = vadd.f32 %v1471, %v1457
    %v1473 = vrot.slane %v1472, 4
    %v1474 = vadd.f32 %v1472, %v1473
    %v1475 = vrot.slane %v1474, 2
    %v1476 = vadd.f32 %v1474, %v1475
    %v1477 = vrot.slane %v1476, 1
    %v1478 = vadd.f32 %v1476, %v1477
    %v1479 = vsel %vm109, %v1446, 0.0
    %v1480 = vsel %vm109, %v1449, 0.0
    %v1481 = vadd.f32 %v1479, %v1480
    %v1482 = vsel %vm109, %v1452, 0.0
    %v1483 = vadd.f32 %v1481, %v1482
    %v1484 = vsel %vm109, %v1455, 0.0
    %v1485 = vadd.f32 %v1483, %v1484
    %v1486 = vsel %vm109, %v1458, 0.0
    %v1487 = vadd.f32 %v1485, %v1486
    %v1488 = vrot.slane %v1487, 4
    %v1489 = vadd.f32 %v1487, %v1488
    %v1490 = vrot.slane %v1489, 2
    %v1491 = vadd.f32 %v1489, %v1490
    %v1492 = vrot.slane %v1491, 1
    %v1493 = vadd.f32 %v1491, %v1492
    %v1494 = vadd.f32 %v1411, %v1468
    %v1495 = vadd.f32 %v1412, %v1478
    %v1496 = vadd.f32 %v1413, %v1493
    %v1497 = vld [vmem:[%s1329 + $0xf0] sm:$0xff]
    %v1498 = vld [vmem:[%s1329 + $0xf8] sm:$0xff]
    %v1499 = vld [vmem:[%s1329 + $0x100] sm:$0xff]
    %v1500 = vld [vmem:[%s1329 + $0x108] sm:$0xff]
    %v1501 = vld [vmem:[%s1329 + $0x110] sm:$0xff]
    %v1502 = vld [vmem:[%s1329 + $0x118] sm:$0xff]
    %v1503 = vld [vmem:[%s1329 + $0x120] sm:$0xff]
    %v1504 = vld [vmem:[%s1329 + $0x128] sm:$0xff]
    %v1505 = vld [vmem:[%s1329 + $0x130] sm:$0xff]
    %v1506 = vld [vmem:[%s1329 + $0x138] sm:$0xff]
    %v1507 = vld [vmem:[%s1329 + $0x140] sm:$0xff]
    %v1508 = vld [vmem:[%s1329 + $0x148] sm:$0xff]
    %v1509 = vld [vmem:[%s1329 + $0x150] sm:$0xff]
    %v1510 = vld [vmem:[%s1329 + $0x158] sm:$0xff]
    %v1511 = vld [vmem:[%s1329 + $0x160] sm:$0xff]
    %v1512 = vld [vmem:[%s1345 + $0xf0] sm:$0xff]
    %v1513 = vld [vmem:[%s1345 + $0xf8] sm:$0xff]
    %v1514 = vld [vmem:[%s1345 + $0x100] sm:$0xff]
    %v1515 = vld [vmem:[%s1345 + $0x108] sm:$0xff]
    %v1516 = vld [vmem:[%s1345 + $0x110] sm:$0xff]
    %v1517 = vld [vmem:[%s1345 + $0x118] sm:$0xff]
    %v1518 = vld [vmem:[%s1345 + $0x120] sm:$0xff]
    %v1519 = vld [vmem:[%s1345 + $0x128] sm:$0xff]
    %v1520 = vld [vmem:[%s1345 + $0x130] sm:$0xff]
    %v1521 = vld [vmem:[%s1345 + $0x138] sm:$0xff]
    %v1522 = vld [vmem:[%s1345 + $0x140] sm:$0xff]
    %v1523 = vld [vmem:[%s1345 + $0x148] sm:$0xff]
    %v1524 = vld [vmem:[%s1345 + $0x150] sm:$0xff]
    %v1525 = vld [vmem:[%s1345 + $0x158] sm:$0xff]
    %v1526 = vld [vmem:[%s1345 + $0x160] sm:$0xff]
    %v1527 = vmul.f32 %v1497, %v1512
    %v1528 = vmul.f32 %v1498, %v1513
    %v1529 = vmul.f32 %v1499, %v1514
    %v1530 = vmul.f32 %v1500, %v1515
    %v1531 = vmul.f32 %v1501, %v1516
    %v1532 = vmul.f32 %v1502, %v1517
    %v1533 = vmul.f32 %v1503, %v1518
    %v1534 = vmul.f32 %v1504, %v1519
    %v1535 = vmul.f32 %v1505, %v1520
    %v1536 = vmul.f32 %v1506, %v1521
    %v1537 = vmul.f32 %v1507, %v1522
    %v1538 = vmul.f32 %v1508, %v1523
    %v1539 = vmul.f32 %v1509, %v1524
    %v1540 = vmul.f32 %v1510, %v1525
    %v1541 = vmul.f32 %v1511, %v1526
    %v1542 = vadd.f32 %v1527, %v1530
    %v1543 = vadd.f32 %v1542, %v1533
    %v1544 = vadd.f32 %v1543, %v1536
    %v1545 = vadd.f32 %v1544, %v1539
    %v1546 = vrot.slane %v1545, 4
    %v1547 = vadd.f32 %v1545, %v1546
    %v1548 = vrot.slane %v1547, 2
    %v1549 = vadd.f32 %v1547, %v1548
    %v1550 = vrot.slane %v1549, 1
    %v1551 = vadd.f32 %v1549, %v1550
    %v1552 = vadd.f32 %v1528, %v1531
    %v1553 = vadd.f32 %v1552, %v1534
    %v1554 = vadd.f32 %v1553, %v1537
    %v1555 = vadd.f32 %v1554, %v1540
    %v1556 = vrot.slane %v1555, 4
    %v1557 = vadd.f32 %v1555, %v1556
    %v1558 = vrot.slane %v1557, 2
    %v1559 = vadd.f32 %v1557, %v1558
    %v1560 = vrot.slane %v1559, 1
    %v1561 = vadd.f32 %v1559, %v1560
    %v1562 = vsel %vm109, %v1529, 0.0
    %v1563 = vsel %vm109, %v1532, 0.0
    %v1564 = vadd.f32 %v1562, %v1563
    %v1565 = vsel %vm109, %v1535, 0.0
    %v1566 = vadd.f32 %v1564, %v1565
    %v1567 = vsel %vm109, %v1538, 0.0
    %v1568 = vadd.f32 %v1566, %v1567
    %v1569 = vsel %vm109, %v1541, 0.0
    %v1570 = vadd.f32 %v1568, %v1569
    %v1571 = vrot.slane %v1570, 4
    %v1572 = vadd.f32 %v1570, %v1571
    %v1573 = vrot.slane %v1572, 2
    %v1574 = vadd.f32 %v1572, %v1573
    %v1575 = vrot.slane %v1574, 1
    %v1576 = vadd.f32 %v1574, %v1575
    %v1577 = vadd.f32 %v1494, %v1551
    %v1578 = vadd.f32 %v1495, %v1561
    %v1579 = vadd.f32 %v1496, %v1576
    %v1580 = vld [vmem:[%s1329 + $0x168] sm:$0xff]
    %v1581 = vld [vmem:[%s1329 + $0x170] sm:$0xff]
    %v1582 = vld [vmem:[%s1329 + $0x178] sm:$0xff]
    %v1583 = vld [vmem:[%s1329 + $0x180] sm:$0xff]
    %v1584 = vld [vmem:[%s1329 + $0x188] sm:$0xff]
    %v1585 = vld [vmem:[%s1329 + $0x190] sm:$0xff]
    %v1586 = vld [vmem:[%s1329 + $0x198] sm:$0xff]
    %v1587 = vld [vmem:[%s1329 + $0x1a0] sm:$0xff]
    %v1588 = vld [vmem:[%s1329 + $0x1a8] sm:$0xff]
    %v1589 = vld [vmem:[%s1329 + $0x1b0] sm:$0xff]
    %v1590 = vld [vmem:[%s1329 + $0x1b8] sm:$0xff]
    %v1591 = vld [vmem:[%s1329 + $0x1c0] sm:$0xff]
    %v1592 = vld [vmem:[%s1329 + $0x1c8] sm:$0xff]
    %v1593 = vld [vmem:[%s1329 + $0x1d0] sm:$0xff]
    %v1594 = vld [vmem:[%s1329 + $0x1d8] sm:$0xff]
    %v1595 = vld [vmem:[%s1345 + $0x168] sm:$0xff]
    %v1596 = vld [vmem:[%s1345 + $0x170] sm:$0xff]
    %v1597 = vld [vmem:[%s1345 + $0x178] sm:$0xff]
    %v1598 = vld [vmem:[%s1345 + $0x180] sm:$0xff]
    %v1599 = vld [vmem:[%s1345 + $0x188] sm:$0xff]
    %v1600 = vld [vmem:[%s1345 + $0x190] sm:$0xff]
    %v1601 = vld [vmem:[%s1345 + $0x198] sm:$0xff]
    %v1602 = vld [vmem:[%s1345 + $0x1a0] sm:$0xff]
    %v1603 = vld [vmem:[%s1345 + $0x1a8] sm:$0xff]
    %v1604 = vld [vmem:[%s1345 + $0x1b0] sm:$0xff]
    %v1605 = vld [vmem:[%s1345 + $0x1b8] sm:$0xff]
    %v1606 = vld [vmem:[%s1345 + $0x1c0] sm:$0xff]
    %v1607 = vld [vmem:[%s1345 + $0x1c8] sm:$0xff]
    %v1608 = vld [vmem:[%s1345 + $0x1d0] sm:$0xff]
    %v1609 = vld [vmem:[%s1345 + $0x1d8] sm:$0xff]
    %v1610 = vmul.f32 %v1580, %v1595
    %v1611 = vmul.f32 %v1581, %v1596
    %v1612 = vmul.f32 %v1582, %v1597
    %v1613 = vmul.f32 %v1583, %v1598
    %v1614 = vmul.f32 %v1584, %v1599
    %v1615 = vmul.f32 %v1585, %v1600
    %v1616 = vmul.f32 %v1586, %v1601
    %v1617 = vmul.f32 %v1587, %v1602
    %v1618 = vmul.f32 %v1588, %v1603
    %v1619 = vmul.f32 %v1589, %v1604
    %v1620 = vmul.f32 %v1590, %v1605
    %v1621 = vmul.f32 %v1591, %v1606
    %v1622 = vmul.f32 %v1592, %v1607
    %v1623 = vmul.f32 %v1593, %v1608
    %v1624 = vmul.f32 %v1594, %v1609
    %v1625 = vadd.f32 %v1610, %v1613
    %v1626 = vadd.f32 %v1625, %v1616
    %v1627 = vadd.f32 %v1626, %v1619
    %v1628 = vadd.f32 %v1627, %v1622
    %v1629 = vrot.slane %v1628, 4
    %v1630 = vadd.f32 %v1628, %v1629
    %v1631 = vrot.slane %v1630, 2
    %v1632 = vadd.f32 %v1630, %v1631
    %v1633 = vrot.slane %v1632, 1
    %v1634 = vadd.f32 %v1632, %v1633
    %v1635 = vadd.f32 %v1611, %v1614
    %v1636 = vadd.f32 %v1635, %v1617
    %v1637 = vadd.f32 %v1636, %v1620
    %v1638 = vadd.f32 %v1637, %v1623
    %v1639 = vrot.slane %v1638, 4
    %v1640 = vadd.f32 %v1638, %v1639
    %v1641 = vrot.slane %v1640, 2
    %v1642 = vadd.f32 %v1640, %v1641
    %v1643 = vrot.slane %v1642, 1
    %v1644 = vadd.f32 %v1642, %v1643
    %v1645 = vsel %vm109, %v1612, 0.0
    %v1646 = vsel %vm109, %v1615, 0.0
    %v1647 = vadd.f32 %v1645, %v1646
    %v1648 = vsel %vm109, %v1618, 0.0
    %v1649 = vadd.f32 %v1647, %v1648
    %v1650 = vsel %vm109, %v1621, 0.0
    %v1651 = vadd.f32 %v1649, %v1650
    %v1652 = vsel %vm109, %v1624, 0.0
    %v1653 = vadd.f32 %v1651, %v1652
    %v1654 = vrot.slane %v1653, 4
    %v1655 = vadd.f32 %v1653, %v1654
    %v1656 = vrot.slane %v1655, 2
    %v1657 = vadd.f32 %v1655, %v1656
    %v1658 = vrot.slane %v1657, 1
    %v1659 = vadd.f32 %v1657, %v1658
    %v1660 = vadd.f32 %v1577, %v1634
    %v1661 = vadd.f32 %v1578, %v1644
    %v1662 = vadd.f32 %v1579, %v1659
    %v1663 = vld [vmem:[%s1329 + $0x1e0] sm:$0xff]
    %v1664 = vld [vmem:[%s1329 + $0x1e8] sm:$0xff]
    %v1665 = vld [vmem:[%s1329 + $0x1f0] sm:$0xff]
    %v1666 = vld [vmem:[%s1329 + $0x1f8] sm:$0xff]
    %v1667 = vld [vmem:[%s1329 + $0x200] sm:$0xff]
    %v1668 = vld [vmem:[%s1329 + $0x208] sm:$0xff]
    %v1669 = vld [vmem:[%s1329 + $0x210] sm:$0xff]
    %v1670 = vld [vmem:[%s1329 + $0x218] sm:$0xff]
    %v1671 = vld [vmem:[%s1329 + $0x220] sm:$0xff]
    %v1672 = vld [vmem:[%s1329 + $0x228] sm:$0xff]
    %v1673 = vld [vmem:[%s1329 + $0x230] sm:$0xff]
    %v1674 = vld [vmem:[%s1329 + $0x238] sm:$0xff]
    %v1675 = vld [vmem:[%s1329 + $0x240] sm:$0xff]
    %v1676 = vld [vmem:[%s1329 + $0x248] sm:$0xff]
    %v1677 = vld [vmem:[%s1329 + $0x250] sm:$0xff]
    %v1678 = vld [vmem:[%s1345 + $0x1e0] sm:$0xff]
    %v1679 = vld [vmem:[%s1345 + $0x1e8] sm:$0xff]
    %v1680 = vld [vmem:[%s1345 + $0x1f0] sm:$0xff]
    %v1681 = vld [vmem:[%s1345 + $0x1f8] sm:$0xff]
    %v1682 = vld [vmem:[%s1345 + $0x200] sm:$0xff]
    %v1683 = vld [vmem:[%s1345 + $0x208] sm:$0xff]
    %v1684 = vld [vmem:[%s1345 + $0x210] sm:$0xff]
    %v1685 = vld [vmem:[%s1345 + $0x218] sm:$0xff]
    %v1686 = vld [vmem:[%s1345 + $0x220] sm:$0xff]
    %v1687 = vld [vmem:[%s1345 + $0x228] sm:$0xff]
    %v1688 = vld [vmem:[%s1345 + $0x230] sm:$0xff]
    %v1689 = vld [vmem:[%s1345 + $0x238] sm:$0xff]
    %v1690 = vld [vmem:[%s1345 + $0x240] sm:$0xff]
    %v1691 = vld [vmem:[%s1345 + $0x248] sm:$0xff]
    %v1692 = vld [vmem:[%s1345 + $0x250] sm:$0xff]
    %v1693 = vmul.f32 %v1663, %v1678
    %v1694 = vmul.f32 %v1664, %v1679
    %v1695 = vmul.f32 %v1665, %v1680
    %v1696 = vmul.f32 %v1666, %v1681
    %v1697 = vmul.f32 %v1667, %v1682
    %v1698 = vmul.f32 %v1668, %v1683
    %v1699 = vmul.f32 %v1669, %v1684
    %v1700 = vmul.f32 %v1670, %v1685
    %v1701 = vmul.f32 %v1671, %v1686
    %v1702 = vmul.f32 %v1672, %v1687
    %v1703 = vmul.f32 %v1673, %v1688
    %v1704 = vmul.f32 %v1674, %v1689
    %v1705 = vmul.f32 %v1675, %v1690
    %v1706 = vmul.f32 %v1676, %v1691
    %v1707 = vmul.f32 %v1677, %v1692
    %v1708 = vadd.f32 %v1693, %v1696
    %v1709 = vadd.f32 %v1708, %v1699
    %v1710 = vadd.f32 %v1709, %v1702
    %v1711 = vadd.f32 %v1710, %v1705
    %v1712 = vrot.slane %v1711, 4
    %v1713 = vadd.f32 %v1711, %v1712
    %v1714 = vrot.slane %v1713, 2
    %v1715 = vadd.f32 %v1713, %v1714
    %v1716 = vrot.slane %v1715, 1
    %v1717 = vadd.f32 %v1715, %v1716
    %v1718 = vadd.f32 %v1694, %v1697
    %v1719 = vadd.f32 %v1718, %v1700
    %v1720 = vadd.f32 %v1719, %v1703
    %v1721 = vadd.f32 %v1720, %v1706
    %v1722 = vrot.slane %v1721, 4
    %v1723 = vadd.f32 %v1721, %v1722
    %v1724 = vrot.slane %v1723, 2
    %v1725 = vadd.f32 %v1723, %v1724
    %v1726 = vrot.slane %v1725, 1
    %v1727 = vadd.f32 %v1725, %v1726
    %v1728 = vsel %vm109, %v1695, 0.0
    %v1729 = vsel %vm109, %v1698, 0.0
    %v1730 = vadd.f32 %v1728, %v1729
    %v1731 = vsel %vm109, %v1701, 0.0
    %v1732 = vadd.f32 %v1730, %v1731
    %v1733 = vsel %vm109, %v1704, 0.0
    %v1734 = vadd.f32 %v1732, %v1733
    %v1735 = vsel %vm109, %v1707, 0.0
    %v1736 = vadd.f32 %v1734, %v1735
    %v1737 = vrot.slane %v1736, 4
    %v1738 = vadd.f32 %v1736, %v1737
    %v1739 = vrot.slane %v1738, 2
    %v1740 = vadd.f32 %v1738, %v1739
    %v1741 = vrot.slane %v1740, 1
    %v1742 = vadd.f32 %v1740, %v1741
    %v1743 = vadd.f32 %v1660, %v1717
    %v1744 = vadd.f32 %v1661, %v1727
    %v1745 = vadd.f32 %v1662, %v1742
    %v1746 = vld [vmem:[%s1329 + $0x258] sm:$0xff]
    %v1747 = vld [vmem:[%s1329 + $0x260] sm:$0xff]
    %v1748 = vld [vmem:[%s1329 + $0x268] sm:$0xff]
    %v1749 = vld [vmem:[%s1329 + $0x270] sm:$0xff]
    %v1750 = vld [vmem:[%s1329 + $0x278] sm:$0xff]
    %v1751 = vld [vmem:[%s1329 + $0x280] sm:$0xff]
    %v1752 = vld [vmem:[%s1329 + $0x288] sm:$0xff]
    %v1753 = vld [vmem:[%s1329 + $0x290] sm:$0xff]
    %v1754 = vld [vmem:[%s1329 + $0x298] sm:$0xff]
    %v1755 = vld [vmem:[%s1329 + $0x2a0] sm:$0xff]
    %v1756 = vld [vmem:[%s1329 + $0x2a8] sm:$0xff]
    %v1757 = vld [vmem:[%s1329 + $0x2b0] sm:$0xff]
    %v1758 = vld [vmem:[%s1329 + $0x2b8] sm:$0xff]
    %v1759 = vld [vmem:[%s1329 + $0x2c0] sm:$0xff]
    %v1760 = vld [vmem:[%s1329 + $0x2c8] sm:$0xff]
    %v1761 = vld [vmem:[%s1345 + $0x258] sm:$0xff]
    %v1762 = vld [vmem:[%s1345 + $0x260] sm:$0xff]
    %v1763 = vld [vmem:[%s1345 + $0x268] sm:$0xff]
    %v1764 = vld [vmem:[%s1345 + $0x270] sm:$0xff]
    %v1765 = vld [vmem:[%s1345 + $0x278] sm:$0xff]
    %v1766 = vld [vmem:[%s1345 + $0x280] sm:$0xff]
    %v1767 = vld [vmem:[%s1345 + $0x288] sm:$0xff]
    %v1768 = vld [vmem:[%s1345 + $0x290] sm:$0xff]
    %v1769 = vld [vmem:[%s1345 + $0x298] sm:$0xff]
    %v1770 = vld [vmem:[%s1345 + $0x2a0] sm:$0xff]
    %v1771 = vld [vmem:[%s1345 + $0x2a8] sm:$0xff]
    %v1772 = vld [vmem:[%s1345 + $0x2b0] sm:$0xff]
    %v1773 = vld [vmem:[%s1345 + $0x2b8] sm:$0xff]
    %v1774 = vld [vmem:[%s1345 + $0x2c0] sm:$0xff]
    %v1775 = vld [vmem:[%s1345 + $0x2c8] sm:$0xff]
    %v1776 = vmul.f32 %v1746, %v1761
    %v1777 = vmul.f32 %v1747, %v1762
    %v1778 = vmul.f32 %v1748, %v1763
    %v1779 = vmul.f32 %v1749, %v1764
    %v1780 = vmul.f32 %v1750, %v1765
    %v1781 = vmul.f32 %v1751, %v1766
    %v1782 = vmul.f32 %v1752, %v1767
    %v1783 = vmul.f32 %v1753, %v1768
    %v1784 = vmul.f32 %v1754, %v1769
    %v1785 = vmul.f32 %v1755, %v1770
    %v1786 = vmul.f32 %v1756, %v1771
    %v1787 = vmul.f32 %v1757, %v1772
    %v1788 = vmul.f32 %v1758, %v1773
    %v1789 = vmul.f32 %v1759, %v1774
    %v1790 = vmul.f32 %v1760, %v1775
    %v1791 = vadd.f32 %v1776, %v1779
    %v1792 = vadd.f32 %v1791, %v1782
    %v1793 = vadd.f32 %v1792, %v1785
    %v1794 = vadd.f32 %v1793, %v1788
    %v1795 = vrot.slane %v1794, 4
    %v1796 = vadd.f32 %v1794, %v1795
    %v1797 = vrot.slane %v1796, 2
    %v1798 = vadd.f32 %v1796, %v1797
    %v1799 = vrot.slane %v1798, 1
    %v1800 = vadd.f32 %v1798, %v1799
    %v1801 = vadd.f32 %v1777, %v1780
    %v1802 = vadd.f32 %v1801, %v1783
    %v1803 = vadd.f32 %v1802, %v1786
    %v1804 = vadd.f32 %v1803, %v1789
    %v1805 = vrot.slane %v1804, 4
    %v1806 = vadd.f32 %v1804, %v1805
    %v1807 = vrot.slane %v1806, 2
    %v1808 = vadd.f32 %v1806, %v1807
    %v1809 = vrot.slane %v1808, 1
    %v1810 = vadd.f32 %v1808, %v1809
    %v1811 = vsel %vm109, %v1778, 0.0
    %v1812 = vsel %vm109, %v1781, 0.0
    %v1813 = vadd.f32 %v1811, %v1812
    %v1814 = vsel %vm109, %v1784, 0.0
    %v1815 = vadd.f32 %v1813, %v1814
    %v1816 = vsel %vm109, %v1787, 0.0
    %v1817 = vadd.f32 %v1815, %v1816
    %v1818 = vsel %vm109, %v1790, 0.0
    %v1819 = vadd.f32 %v1817, %v1818
    %v1820 = vrot.slane %v1819, 4
    %v1821 = vadd.f32 %v1819, %v1820
    %v1822 = vrot.slane %v1821, 2
    %v1823 = vadd.f32 %v1821, %v1822
    %v1824 = vrot.slane %v1823, 1
    %v1825 = vadd.f32 %v1823, %v1824
    %v1826 = vadd.f32 %v1743, %v1800
    %v1827 = vadd.f32 %v1744, %v1810
    %v1828 = vadd.f32 %v1745, %v1825
    %v1829 = vld [vmem:[%s1329 + $0x2d0] sm:$0xff]
    %v1830 = vld [vmem:[%s1329 + $0x2d8] sm:$0xff]
    %v1831 = vld [vmem:[%s1329 + $0x2e0] sm:$0xff]
    %v1832 = vld [vmem:[%s1329 + $0x2e8] sm:$0xff]
    %v1833 = vld [vmem:[%s1329 + $0x2f0] sm:$0xff]
    %v1834 = vld [vmem:[%s1329 + $0x2f8] sm:$0xff]
    %v1835 = vld [vmem:[%s1329 + $0x300] sm:$0xff]
    %v1836 = vld [vmem:[%s1329 + $0x308] sm:$0xff]
    %v1837 = vld [vmem:[%s1329 + $0x310] sm:$0xff]
    %v1838 = vld [vmem:[%s1329 + $0x318] sm:$0xff]
    %v1839 = vld [vmem:[%s1329 + $0x320] sm:$0xff]
    %v1840 = vld [vmem:[%s1329 + $0x328] sm:$0xff]
    %v1841 = vld [vmem:[%s1329 + $0x330] sm:$0xff]
    %v1842 = vld [vmem:[%s1329 + $0x338] sm:$0xff]
    %v1843 = vld [vmem:[%s1329 + $0x340] sm:$0xff]
    %v1844 = vld [vmem:[%s1345 + $0x2d0] sm:$0xff]
    %v1845 = vld [vmem:[%s1345 + $0x2d8] sm:$0xff]
    %v1846 = vld [vmem:[%s1345 + $0x2e0] sm:$0xff]
    %v1847 = vld [vmem:[%s1345 + $0x2e8] sm:$0xff]
    %v1848 = vld [vmem:[%s1345 + $0x2f0] sm:$0xff]
    %v1849 = vld [vmem:[%s1345 + $0x2f8] sm:$0xff]
    %v1850 = vld [vmem:[%s1345 + $0x300] sm:$0xff]
    %v1851 = vld [vmem:[%s1345 + $0x308] sm:$0xff]
    %v1852 = vld [vmem:[%s1345 + $0x310] sm:$0xff]
    %v1853 = vld [vmem:[%s1345 + $0x318] sm:$0xff]
    %v1854 = vld [vmem:[%s1345 + $0x320] sm:$0xff]
    %v1855 = vld [vmem:[%s1345 + $0x328] sm:$0xff]
    %v1856 = vld [vmem:[%s1345 + $0x330] sm:$0xff]
    %v1857 = vld [vmem:[%s1345 + $0x338] sm:$0xff]
    %v1858 = vld [vmem:[%s1345 + $0x340] sm:$0xff]
    %v1859 = vmul.f32 %v1829, %v1844
    %v1860 = vmul.f32 %v1830, %v1845
    %v1861 = vmul.f32 %v1831, %v1846
    %v1862 = vmul.f32 %v1832, %v1847
    %v1863 = vmul.f32 %v1833, %v1848
    %v1864 = vmul.f32 %v1834, %v1849
    %v1865 = vmul.f32 %v1835, %v1850
    %v1866 = vmul.f32 %v1836, %v1851
    %v1867 = vmul.f32 %v1837, %v1852
    %v1868 = vmul.f32 %v1838, %v1853
    %v1869 = vmul.f32 %v1839, %v1854
    %v1870 = vmul.f32 %v1840, %v1855
    %v1871 = vmul.f32 %v1841, %v1856
    %v1872 = vmul.f32 %v1842, %v1857
    %v1873 = vmul.f32 %v1843, %v1858
    %v1874 = vadd.f32 %v1859, %v1862
    %v1875 = vadd.f32 %v1874, %v1865
    %v1876 = vadd.f32 %v1875, %v1868
    %v1877 = vadd.f32 %v1876, %v1871
    %v1878 = vrot.slane %v1877, 4
    %v1879 = vadd.f32 %v1877, %v1878
    %v1880 = vrot.slane %v1879, 2
    %v1881 = vadd.f32 %v1879, %v1880
    %v1882 = vrot.slane %v1881, 1
    %v1883 = vadd.f32 %v1881, %v1882
    %v1884 = vadd.f32 %v1860, %v1863
    %v1885 = vadd.f32 %v1884, %v1866
    %v1886 = vadd.f32 %v1885, %v1869
    %v1887 = vadd.f32 %v1886, %v1872
    %v1888 = vrot.slane %v1887, 4
    %v1889 = vadd.f32 %v1887, %v1888
    %v1890 = vrot.slane %v1889, 2
    %v1891 = vadd.f32 %v1889, %v1890
    %v1892 = vrot.slane %v1891, 1
    %v1893 = vadd.f32 %v1891, %v1892
    %v1894 = vsel %vm109, %v1861, 0.0
    %v1895 = vsel %vm109, %v1864, 0.0
    %v1896 = vadd.f32 %v1894, %v1895
    %v1897 = vsel %vm109, %v1867, 0.0
    %v1898 = vadd.f32 %v1896, %v1897
    %v1899 = vsel %vm109, %v1870, 0.0
    %v1900 = vadd.f32 %v1898, %v1899
    %v1901 = vsel %vm109, %v1873, 0.0
    %v1902 = vadd.f32 %v1900, %v1901
    %v1903 = vrot.slane %v1902, 4
    %v1904 = vadd.f32 %v1902, %v1903
    %v1905 = vrot.slane %v1904, 2
    %v1906 = vadd.f32 %v1904, %v1905
    %v1907 = vrot.slane %v1906, 1
    %v1908 = vadd.f32 %v1906, %v1907
    %v1909 = vadd.f32 %v1826, %v1883
    %v1910 = vadd.f32 %v1827, %v1893
    %v1911 = vadd.f32 %v1828, %v1908
    %v1912 = vld [vmem:[%s1329 + $0x348] sm:$0xff]
    %v1913 = vld [vmem:[%s1329 + $0x350] sm:$0xff]
    %v1914 = vld [vmem:[%s1329 + $0x358] sm:$0xff]
    %v1915 = vld [vmem:[%s1329 + $0x360] sm:$0xff]
    %v1916 = vld [vmem:[%s1329 + $0x368] sm:$0xff]
    %v1917 = vld [vmem:[%s1329 + $0x370] sm:$0xff]
    %v1918 = vld [vmem:[%s1329 + $0x378] sm:$0xf]
    %v1919 = vld [vmem:[%s1329 + $0x380] sm:$0xf]
    %v1920 = vld [vmem:[%s1329 + $0x388] sm:$0xf]
    %v1921 = vld [vmem:[%s1345 + $0x348] sm:$0xff]
    %v1922 = vld [vmem:[%s1345 + $0x350] sm:$0xff]
    %v1923 = vld [vmem:[%s1345 + $0x358] sm:$0xff]
    %v1924 = vld [vmem:[%s1345 + $0x360] sm:$0xff]
    %v1925 = vld [vmem:[%s1345 + $0x368] sm:$0xff]
    %v1926 = vld [vmem:[%s1345 + $0x370] sm:$0xff]
    %v1927 = vld [vmem:[%s1345 + $0x378] sm:$0xf]
    %v1928 = vld [vmem:[%s1345 + $0x380] sm:$0xf]
    %v1929 = vld [vmem:[%s1345 + $0x388] sm:$0xf]
    %v1930 = vmul.f32 %v1912, %v1921
    %v1931 = vmul.f32 %v1913, %v1922
    %v1932 = vmul.f32 %v1914, %v1923
    %v1933 = vmul.f32 %v1915, %v1924
    %v1934 = vmul.f32 %v1916, %v1925
    %v1935 = vmul.f32 %v1917, %v1926
    %v1936 = vmul.f32 %v1918, %v1927
    %v1937 = vmul.f32 %v1919, %v1928
    %v1938 = vmul.f32 %v1920, %v1929
    %v1939 = vadd.f32 %v1930, %v1933
    %v1940 = vsel %vm654, %v1936, 0.0
    %v1941 = vadd.f32 %v1939, %v1940
    %v1942 = vrot.slane %v1941, 4
    %v1943 = vadd.f32 %v1941, %v1942
    %v1944 = vrot.slane %v1943, 2
    %v1945 = vadd.f32 %v1943, %v1944
    %v1946 = vrot.slane %v1945, 1
    %v1947 = vadd.f32 %v1945, %v1946
    %v1948 = vadd.f32 %v1931, %v1934
    %v1949 = vsel %vm654, %v1937, 0.0
    %v1950 = vadd.f32 %v1948, %v1949
    %v1951 = vrot.slane %v1950, 4
    %v1952 = vadd.f32 %v1950, %v1951
    %v1953 = vrot.slane %v1952, 2
    %v1954 = vadd.f32 %v1952, %v1953
    %v1955 = vrot.slane %v1954, 1
    %v1956 = vadd.f32 %v1954, %v1955
    %v1957 = vsel %vm109, %v1932, 0.0
    %v1958 = vsel %vm109, %v1935, 0.0
    %v1959 = vadd.f32 %v1957, %v1958
    %v1960 = vsel %vm675, %v1938, 0.0
    %v1961 = vadd.f32 %v1959, %v1960
    %v1962 = vrot.slane %v1961, 4
    %v1963 = vadd.f32 %v1961, %v1962
    %v1964 = vrot.slane %v1963, 2
    %v1965 = vadd.f32 %v1963, %v1964
    %v1966 = vrot.slane %v1965, 1
    %v1967 = vadd.f32 %v1965, %v1966
    %v1968 = vadd.f32 %v1909, %v1947
    %v1969 = vadd.f32 %v1910, %v1956
    %v1970 = vadd.f32 %v1911, %v1967
    %v1971 = vadd.f32 %v1968, %v1969
    %v1972 = vsel %vm109, %v1970, 0.0
    %v1973 = vadd.f32 %v1971, %v1972
    %1974 = vadd.xlane.f32.xlu0 %v1973
    %v1975 = vpop.xlane.xlu0 %1974
    %s1976 = sld [smem:[#allocation2]]
    %v1977 = vstv %s1976
    %v1978 = vadd.f32 %v1975, %v1977
    %vm1979 = vcmp.ge.f32.partialorder %v1978, 0.0
    %v1980 = vsub.f32 0.0, %v1978
    %v1981 = vmul.f32 %v1980, 1.442695
    %v1982 = vpow.pop %v1981
    %v1983 = vadd.f32 %v1982, 1.0
    %v1984 = vrcp.pop %v1983
    %v1985 = vmul.f32 1.0, %v1984
    %v1986 = vmul.f32 %v1978, 1.442695
    %v1987 = vpow.pop %v1986
    %v1988 = vadd.f32 %v1987, 1.0
    %v1989 = vrcp.pop %v1988
    %v1990 = vmul.f32 %v1987, %v1989
    %v1991 = vsel %vm1979, %v1985, %v1990
    %vm1992 = vcmask 0
    %1993 = vst.msk [vmem:[#allocation8] sm:$0x1] %vm1992, %v1991
    // Predicated region
    $region22: #{naive_classifier_forward.1} parent=1 // pred_check
      _
    $region23: #{naive_classifier_forward.1} parent=1 // pred_check_branch
      %1995 = sbr.rel (0) target = $region25
    $region24: #{naive_classifier_forward.1} parent=1 // pred_region
      %s1997 = ssub.s32 16, 16
      %1998 = vsyncadd [#allocation5], %s1997
      %s2000 = sshll.u32 [#allocation8], 4
      %s2001 = int_to_ptr.vmem [resolvable:$true] %s2000
      %2003 = dma.vmem_to_hbm [thread:$0]  %s2001, 16, %s3, [#allocation5]
    $region25: #{naive_classifier_forward.1} parent=1 // pred_fallthru
      _
    // Predicated region
    $region26: #{naive_classifier_forward.1} parent=1 // pred_check
      _
    $region27: #{naive_classifier_forward.1} parent=1 // pred_check_branch
      %2005 = sbr.rel (0) target = $region29
    $region28: #{naive_classifier_forward.1} parent=1 // pred_region
      %2006 = dma.done [#allocation5], 16
    $region29: #{naive_classifier_forward.1} parent=1 // pred_fallthru
      _
    %2007 = vsyncpa [#allocation4], 1
    %2008 = vsyncpa [#allocation7], 1
    %2009 = vsyncpa [#allocation5], 1

</llo_original>
